<compile_context>
chip_gen: v5e
topology: v5e:2x2
jax: 0.10.0
libtpu: 0.0.40
codegen_flags: <defaults>
</compile_context>

<pallas_src>
import math
from functools import partial

import jax
import jax.numpy as jnp
from jax.experimental import pallas as pl
from jax.experimental.pallas import tpu as pltpu


def _film_decoder_layer_kernel(
    # data
    t_ref,        # (1, 1, D)  f32, per-batch FiLM conditioning row
    x_ref,        # (1, T, D)  f32, per-batch block of tgt
    mem_ref,      # (1, S, D)  f32, per-batch block of memory
    # fused FiLM generator weights (film1|film2|film3 concatenated on out axis)
    film_w_ref,   # (D, 6D)    bf16
    film_b_ref,   # (1, 6D)    f32
    # layer norms (rows: norm1, norm2, norm3)
    ln_g_ref,     # (3, D)     f32
    ln_b_ref,     # (3, D)     f32
    # self-attention
    sa_wqkv_ref,  # (D, 3D)    bf16
    sa_bqkv_ref,  # (1, 3D)    f32
    sa_wo_ref,    # (D, D)     bf16
    sa_bo_ref,    # (1, D)     f32
    # cross-attention (q from x, fused k|v from memory)
    ca_wq_ref,    # (D, D)     bf16
    ca_bq_ref,    # (1, D)     f32
    ca_wkv_ref,   # (D, 2D)    bf16
    ca_bkv_ref,   # (1, 2D)    f32
    ca_wo_ref,    # (D, D)     bf16
    ca_bo_ref,    # (1, D)     f32
    # feed-forward
    ff_w1_ref,    # (D, F)     bf16
    ff_b1_ref,    # (1, F)     f32
    ff_w2_ref,    # (F, D)     bf16
    ff_b2_ref,    # (1, D)     f32
    # output
    o_ref,        # (1, T, D)
    *, nhead, eps):
    _, T, D = x_ref.shape
    hd = D // nhead
    inv_sqrt_hd = 1.0 / math.sqrt(hd)
    cdt = jnp.bfloat16  # MXU operand dtype

    x = x_ref[0].astype(jnp.float32)        # (T, D)
    mem = mem_ref[0].astype(jnp.float32)    # (S, D)
    tvec = t_ref[0].astype(jnp.float32)     # (1, D)

    # ---- FiLM: all three generators in one bf16 matmul ----------------------
    # Mish(x) = x * tanh(softplus(x)); numerically stable softplus (f32, VPU/EUP).
    sp = jnp.maximum(tvec, 0.0) + jnp.log1p(jnp.exp(-jnp.abs(tvec)))
    tm = tvec * jnp.tanh(sp)
    film = jnp.dot(tm.astype(cdt), film_w_ref[...],
                   preferred_element_type=jnp.float32)
    film = film + film_b_ref[...]           # (1, 6D) f32 = [s1|h1|s2|h2|s3|h3]

    def affine(v, i):
        sc = film[:, (2 * i) * D:(2 * i + 1) * D]        # (1, D)
        sh = film[:, (2 * i + 1) * D:(2 * i + 2) * D]    # (1, D)
        return (sc + 1.0) * v + sh                       # broadcast over rows

    ln_g = ln_g_ref[...]
    ln_b = ln_b_ref[...]

    def layer_norm(v, i):                                # f32 throughout
        g = ln_g[i:i + 1, :]
        bb = ln_b[i:i + 1, :]
        mu = jnp.mean(v, axis=-1, keepdims=True)
        var = jnp.mean(jnp.square(v - mu), axis=-1, keepdims=True)
        return (v - mu) * jax.lax.rsqrt(var + eps) * g + bb

    def attend(q, kT, v, wo_ref, bo_ref):
        # q: (Tq, D) bf16, kT: (D, S) bf16 (K already transposed once),
        # v: (S, D) bf16.  Per-head scores/softmax/PV, output accumulated
        # through the matching rows of W_o (no lane concat).
        out = jnp.zeros((q.shape[0], D), jnp.float32)
        for h in range(nhead):                           # static unroll over heads
            lo = h * hd
            qh = q[:, lo:lo + hd]                        # (Tq, hd)
            kTh = kT[lo:lo + hd, :]                      # (hd, S)
            vh = v[:, lo:lo + hd]                        # (S, hd)
            s = jnp.dot(qh, kTh, preferred_element_type=jnp.float32) * inv_sqrt_hd
            s = s - jnp.max(s, axis=-1, keepdims=True)   # f32 softmax
            p = jnp.exp(s)
            p = p * pl.reciprocal(jnp.sum(p, axis=-1, keepdims=True), approx=True)
            oh = jnp.dot(p.astype(cdt), vh, preferred_element_type=jnp.float32)
            out = out + jnp.dot(oh.astype(cdt), wo_ref[lo:lo + hd, :],
                                preferred_element_type=jnp.float32)
        return out + bo_ref[...]

    # TODO(synk): attn_mask / key_padding_mask and rotary embeddings not
    # implemented (module used with rotary=None, no masks); dropout is identity.

    # ---- block 1: self-attention + FiLM --------------------------------------
    xn = layer_norm(x, 0)
    qkv = jnp.dot(xn.astype(cdt), sa_wqkv_ref[...],
                  preferred_element_type=jnp.float32) + sa_bqkv_ref[...]   # (T, 3D) f32
    q = qkv[:, 0:D].astype(cdt)
    kT = qkv[:, D:2 * D].T.astype(cdt)                   # one K transpose, hoisted
    v = qkv[:, 2 * D:3 * D].astype(cdt)
    sa = attend(q, kT, v, sa_wo_ref, sa_bo_ref)
    x = x + affine(sa, 0)

    # ---- block 2: cross-attention + FiLM --------------------------------------
    xn = layer_norm(x, 1)
    q = (jnp.dot(xn.astype(cdt), ca_wq_ref[...],
                 preferred_element_type=jnp.float32) + ca_bq_ref[...]).astype(cdt)
    kv = jnp.dot(mem.astype(cdt), ca_wkv_ref[...],
                 preferred_element_type=jnp.float32) + ca_bkv_ref[...]     # (S, 2D) f32
    kT = kv[:, 0:D].T.astype(cdt)
    v = kv[:, D:2 * D].astype(cdt)
    ca = attend(q, kT, v, ca_wo_ref, ca_bo_ref)
    x = x + affine(ca, 1)

    # ---- block 3: feed-forward + FiLM ------------------------------------------
    xn = layer_norm(x, 2)
    h1 = jnp.dot(xn.astype(cdt), ff_w1_ref[...],
                 preferred_element_type=jnp.float32) + ff_b1_ref[...]
    h1 = jnp.maximum(h1, 0.0)                            # relu (f32)
    ff = jnp.dot(h1.astype(cdt), ff_w2_ref[...],
                 preferred_element_type=jnp.float32) + ff_b2_ref[...]
    x = x + affine(ff, 2)

    o_ref[0] = x.astype(o_ref.dtype)


def film_transformer_decoder_layer(tgt, memory, t, params, *, nhead, eps=1e-5):
    """tgt: (B, T, D); memory: (B, S, D); t: (B, D)  ->  (B, T, D).

    Matmul weights in `params` are expected in bf16 (pre-transposed to
    (in_features, out_features)); biases / layernorm params / inputs in f32.
    """
    B, T, D = tgt.shape
    S = memory.shape[1]
    DFF = params["ff_w1"].shape[1]

    kernel = partial(_film_decoder_layer_kernel, nhead=nhead, eps=eps)
    w2 = lambda b: (0, 0)              # constant index map -> weight stays resident
    per_batch = lambda b: (b, 0, 0)

    t3 = t.reshape(B, 1, D)            # per-batch blockable conditioning vector

    return pl.pallas_call(
        kernel,
        out_shape=jax.ShapeDtypeStruct((B, T, D), tgt.dtype),
        grid=(B,),
        in_specs=[
            pl.BlockSpec((1, 1, D), per_batch),     # t (per-batch row)
            pl.BlockSpec((1, T, D), per_batch),     # tgt
            pl.BlockSpec((1, S, D), per_batch),     # memory
            pl.BlockSpec((D, 6 * D), w2),           # fused film weight (bf16)
            pl.BlockSpec((1, 6 * D), w2),           # fused film bias
            pl.BlockSpec((3, D), w2),               # ln gamma
            pl.BlockSpec((3, D), w2),               # ln beta
            pl.BlockSpec((D, 3 * D), w2),           # self-attn fused qkv weight (bf16)
            pl.BlockSpec((1, 3 * D), w2),           # self-attn fused qkv bias
            pl.BlockSpec((D, D), w2),               # self-attn out weight (bf16)
            pl.BlockSpec((1, D), w2),               # self-attn out bias
            pl.BlockSpec((D, D), w2),               # cross-attn q weight (bf16)
            pl.BlockSpec((1, D), w2),               # cross-attn q bias
            pl.BlockSpec((D, 2 * D), w2),           # cross-attn fused kv weight (bf16)
            pl.BlockSpec((1, 2 * D), w2),           # cross-attn fused kv bias
            pl.BlockSpec((D, D), w2),               # cross-attn out weight (bf16)
            pl.BlockSpec((1, D), w2),               # cross-attn out bias
            pl.BlockSpec((D, DFF), w2),             # ffn w1 (bf16)
            pl.BlockSpec((1, DFF), w2),             # ffn b1
            pl.BlockSpec((DFF, D), w2),             # ffn w2 (bf16)
            pl.BlockSpec((1, D), w2),               # ffn b2
        ],
        out_specs=pl.BlockSpec((1, T, D), per_batch),
        compiler_params=pltpu.CompilerParams(
            dimension_semantics=("parallel",),       # v7x: shard batches over both TCs
            vmem_limit_bytes=64 * 1024 * 1024),      # raise scoped VMEM limit
    )(t3, tgt, memory,
      params["film_w"], params["film_b"],
      params["ln_g"], params["ln_b"],
      params["sa_wqkv"], params["sa_bqkv"], params["sa_wo"], params["sa_bo"],
      params["ca_wq"], params["ca_bq"], params["ca_wkv"], params["ca_bkv"],
      params["ca_wo"], params["ca_bo"],
      params["ff_w1"], params["ff_b1"], params["ff_w2"], params["ff_b2"])


# ------------------------------ reference (pure JAX, f32) ---------------------
def _ref_layer(tgt, memory, t, p, nhead, eps=1e-5):
    D = tgt.shape[-1]
    hd = D // nhead
    f = lambda a: jnp.asarray(a, jnp.float32)

    def mish(v):
        return v * jnp.tanh(jax.nn.softplus(v))

    def layer_norm(v, g, b):
        mu = jnp.mean(v, -1, keepdims=True)
        var = jnp.mean(jnp.square(v - mu), -1, keepdims=True)
        return (v - mu) * jax.lax.rsqrt(var + eps) * g + b

    def film(i):
        w = f(p["film_w"])[:, 2 * i * D:(2 * i + 2) * D]
        b = f(p["film_b"])[0, 2 * i * D:(2 * i + 2) * D]
        y = (mish(t) @ w + b)[:, None, :]
        return y[..., :D], y[..., D:]

    def affine(v, ss):
        sc, sh = ss
        return (sc + 1.0) * v + sh

    def mha(q_in, k_in, v_in, wq, bq, wk, bk, wv, bv, wo, bo):
        q = q_in @ wq + bq
        k = k_in @ wk + bk
        v = v_in @ wv + bv
        B_, Tq, _ = q.shape
        Sk = k.shape[1]
        qh = q.reshape(B_, Tq, nhead, hd).transpose(0, 2, 1, 3)
        kh = k.reshape(B_, Sk, nhead, hd).transpose(0, 2, 1, 3)
        vh = v.reshape(B_, Sk, nhead, hd).transpose(0, 2, 1, 3)
        s = jnp.einsum("bhtd,bhsd->bhts", qh, kh) / math.sqrt(hd)
        a = jax.nn.softmax(s, axis=-1)
        o = jnp.einsum("bhts,bhsd->bhtd", a, vh)
        o = o.transpose(0, 2, 1, 3).reshape(B_, Tq, D)
        return o @ wo + bo

    sa_w, sa_b = f(p["sa_wqkv"]), f(p["sa_bqkv"])[0]
    ca_wq, ca_bq = f(p["ca_wq"]), f(p["ca_bq"])[0]
    ca_wkv, ca_bkv = f(p["ca_wkv"]), f(p["ca_bkv"])[0]
    ln_g, ln_b = f(p["ln_g"]), f(p["ln_b"])

    x = tgt
    xn = layer_norm(x, ln_g[0], ln_b[0])
    sa = mha(xn, xn, xn,
             sa_w[:, :D], sa_b[:D], sa_w[:, D:2 * D], sa_b[D:2 * D],
             sa_w[:, 2 * D:], sa_b[2 * D:], f(p["sa_wo"]), f(p["sa_bo"])[0])
    x = x + affine(sa, film(0))
    xn = layer_norm(x, ln_g[1], ln_b[1])
    ca = mha(xn, memory, memory,
             ca_wq, ca_bq, ca_wkv[:, :D], ca_bkv[:D],
             ca_wkv[:, D:], ca_bkv[D:], f(p["ca_wo"]), f(p["ca_bo"])[0])
    x = x + affine(ca, film(1))
    xn = layer_norm(x, ln_g[2], ln_b[2])
    h = jax.nn.relu(xn @ f(p["ff_w1"]) + f(p["ff_b1"])[0])
    ff = h @ f(p["ff_w2"]) + f(p["ff_b2"])[0]
    x = x + affine(ff, film(2))
    return x


# ------------------------------ demo / check ---------------------------------
if __name__ == "__main__":
    B, T, S = 2, 8, 8
    D, H, DFF = 32, 4, 64

    key = jax.random.PRNGKey(0)
    ks = jax.random.split(key, 32)

    def uni(k, shape, fan_in):
        bound = 1.0 / math.sqrt(fan_in)
        return jax.random.uniform(k, shape, jnp.float32, -bound, bound)

    bf16 = lambda a: a.astype(jnp.bfloat16)

    # FiLM generators: three nn.Linear(D, 2D); pre-transposed and fused on out axis.
    film_w = jnp.concatenate([uni(ks[i], (D, 2 * D), D) for i in range(3)], axis=1)
    film_b = jnp.concatenate([uni(ks[3 + i], (2 * D,), D) for i in range(3)],
                             axis=0).reshape(1, 6 * D)
    ca_wqkv = uni(ks[12], (D, 3 * D), D)
    ca_bqkv = uni(ks[13], (1, 3 * D), D)

    params = {
        # matmul weights stored in bf16 (MXU operands); everything else f32
        "film_w": bf16(film_w),
        "film_b": film_b,
        "ln_g": 1.0 + 0.1 * jax.random.normal(ks[6], (3, D), jnp.float32),
        "ln_b": 0.1 * jax.random.normal(ks[7], (3, D), jnp.float32),
        "sa_wqkv": bf16(uni(ks[8], (D, 3 * D), D)),
        "sa_bqkv": uni(ks[9], (1, 3 * D), D),
        "sa_wo": bf16(uni(ks[10], (D, D), D)),
        "sa_bo": uni(ks[11], (1, D), D),
        "ca_wq": bf16(ca_wqkv[:, :D]),
        "ca_bq": ca_bqkv[:, :D],
        "ca_wkv": bf16(ca_wqkv[:, D:]),
        "ca_bkv": ca_bqkv[:, D:],
        "ca_wo": bf16(uni(ks[14], (D, D), D)),
        "ca_bo": uni(ks[15], (1, D), D),
        "ff_w1": bf16(uni(ks[16], (D, DFF), D)),
        "ff_b1": uni(ks[17], (1, DFF), D),
        "ff_w2": bf16(uni(ks[18], (DFF, D), DFF)),
        "ff_b2": uni(ks[19], (1, D), DFF),
    }

    tgt = jax.random.normal(ks[20], (B, T, D), jnp.float32)
    memory = jax.random.normal(ks[21], (B, S, D), jnp.float32)
    t = jax.random.normal(ks[22], (B, D), jnp.float32)

    out = film_transformer_decoder_layer(tgt, memory, t, params, nhead=H)
    jax.block_until_ready(out)

    # Reference uses the same (bf16-rounded) weights upcast to f32; remaining
    # difference comes only from in-kernel bf16 activation casts + approx recip.
    ref = _ref_layer(tgt, memory, t, params, nhead=H)
    assert out.shape == (B, T, D)
    err = float(jnp.max(jnp.abs(out - ref)))
    assert jnp.allclose(out, ref, atol=5e-2, rtol=5e-2), err

    print("KERNEL_OK")
</pallas_src>

<mosaic_0001>
module attributes {stable_mosaic.version = 11 : i64} {
  func.func @_film_decoder_layer_kernel(%arg0: i32, %arg1: memref<1x1x32xf32, #tpu.memory_space<vmem>>, %arg2: memref<1x8x32xf32, #tpu.memory_space<vmem>>, %arg3: memref<1x8x32xf32, #tpu.memory_space<vmem>>, %arg4: memref<32x192xbf16, #tpu.memory_space<vmem>>, %arg5: memref<1x192xf32, #tpu.memory_space<vmem>>, %arg6: memref<3x32xf32, #tpu.memory_space<vmem>>, %arg7: memref<3x32xf32, #tpu.memory_space<vmem>>, %arg8: memref<32x96xbf16, #tpu.memory_space<vmem>>, %arg9: memref<1x96xf32, #tpu.memory_space<vmem>>, %arg10: memref<32x32xbf16, #tpu.memory_space<vmem>>, %arg11: memref<1x32xf32, #tpu.memory_space<vmem>>, %arg12: memref<32x32xbf16, #tpu.memory_space<vmem>>, %arg13: memref<1x32xf32, #tpu.memory_space<vmem>>, %arg14: memref<32x64xbf16, #tpu.memory_space<vmem>>, %arg15: memref<1x64xf32, #tpu.memory_space<vmem>>, %arg16: memref<32x32xbf16, #tpu.memory_space<vmem>>, %arg17: memref<1x32xf32, #tpu.memory_space<vmem>>, %arg18: memref<32x64xbf16, #tpu.memory_space<vmem>>, %arg19: memref<1x64xf32, #tpu.memory_space<vmem>>, %arg20: memref<64x32xbf16, #tpu.memory_space<vmem>>, %arg21: memref<1x32xf32, #tpu.memory_space<vmem>>, %arg22: memref<1x8x32xf32, #tpu.memory_space<vmem>>) attributes {dimension_semantics = [#tpu.dimension_semantics<parallel>], iteration_bounds = array<i64: 2>, scalar_prefetch = 0 : i64, scratch_operands = 0 : i64, tpu.core_type = #tpu.core_type<tc>, window_params = [{transform_indices = @transform_0, window_bounds = array<i64: 1, 1, 32>}, {transform_indices = @transform_1, window_bounds = array<i64: 1, 8, 32>}, {transform_indices = @transform_2, window_bounds = array<i64: 1, 8, 32>}, {pipeline_mode = #tpu.pipeline_mode<synchronous>, transform_indices = @transform_3, window_bounds = array<i64: 32, 192>}, {pipeline_mode = #tpu.pipeline_mode<synchronous>, transform_indices = @transform_4, window_bounds = array<i64: 1, 192>}, {pipeline_mode = #tpu.pipeline_mode<synchronous>, transform_indices = @transform_5, window_bounds = array<i64: 3, 32>}, {pipeline_mode = #tpu.pipeline_mode<synchronous>, transform_indices = @transform_6, window_bounds = array<i64: 3, 32>}, {pipeline_mode = #tpu.pipeline_mode<synchronous>, transform_indices = @transform_7, window_bounds = array<i64: 32, 96>}, {pipeline_mode = #tpu.pipeline_mode<synchronous>, transform_indices = @transform_8, window_bounds = array<i64: 1, 96>}, {pipeline_mode = #tpu.pipeline_mode<synchronous>, transform_indices = @transform_9, window_bounds = array<i64: 32, 32>}, {pipeline_mode = #tpu.pipeline_mode<synchronous>, transform_indices = @transform_10, window_bounds = array<i64: 1, 32>}, {pipeline_mode = #tpu.pipeline_mode<synchronous>, transform_indices = @transform_11, window_bounds = array<i64: 32, 32>}, {pipeline_mode = #tpu.pipeline_mode<synchronous>, transform_indices = @transform_12, window_bounds = array<i64: 1, 32>}, {pipeline_mode = #tpu.pipeline_mode<synchronous>, transform_indices = @transform_13, window_bounds = array<i64: 32, 64>}, {pipeline_mode = #tpu.pipeline_mode<synchronous>, transform_indices = @transform_14, window_bounds = array<i64: 1, 64>}, {pipeline_mode = #tpu.pipeline_mode<synchronous>, transform_indices = @transform_15, window_bounds = array<i64: 32, 32>}, {pipeline_mode = #tpu.pipeline_mode<synchronous>, transform_indices = @transform_16, window_bounds = array<i64: 1, 32>}, {pipeline_mode = #tpu.pipeline_mode<synchronous>, transform_indices = @transform_17, window_bounds = array<i64: 32, 64>}, {pipeline_mode = #tpu.pipeline_mode<synchronous>, transform_indices = @transform_18, window_bounds = array<i64: 1, 64>}, {pipeline_mode = #tpu.pipeline_mode<synchronous>, transform_indices = @transform_19, window_bounds = array<i64: 64, 32>}, {pipeline_mode = #tpu.pipeline_mode<synchronous>, transform_indices = @transform_20, window_bounds = array<i64: 1, 32>}, {transform_indices = @transform_21, window_bounds = array<i64: 1, 8, 32>}]} {
    %c0 = arith.constant 0 : index
    %c0_0 = arith.constant 0 : index
    %c0_1 = arith.constant 0 : index
    %0 = vector.load %arg2[%c0, %c0_0, %c0_1] : memref<1x8x32xf32, #tpu.memory_space<vmem>>, vector<1x8x32xf32>
    %1 = vector.shape_cast %0 : vector<1x8x32xf32> to vector<8x32xf32>
    %c0_2 = arith.constant 0 : index
    %c0_3 = arith.constant 0 : index
    %c0_4 = arith.constant 0 : index
    %2 = vector.load %arg3[%c0_2, %c0_3, %c0_4] : memref<1x8x32xf32, #tpu.memory_space<vmem>>, vector<1x8x32xf32>
    %3 = vector.shape_cast %2 : vector<1x8x32xf32> to vector<8x32xf32>
    %c0_5 = arith.constant 0 : index
    %c0_6 = arith.constant 0 : index
    %c0_7 = arith.constant 0 : index
    %4 = vector.load %arg1[%c0_5, %c0_6, %c0_7] : memref<1x1x32xf32, #tpu.memory_space<vmem>>, vector<1x1x32xf32>
    %5 = vector.shape_cast %4 : vector<1x1x32xf32> to vector<1x32xf32>
    %cst = arith.constant 0.000000e+00 : f32
    %6 = vector.broadcast %cst : f32 to vector<1x32xf32>
    %7 = arith.maximumf %5, %6 : vector<1x32xf32>
    %8 = math.absf %5 : vector<1x32xf32>
    %cst_8 = arith.constant 0.000000e+00 : f32
    %9 = vector.broadcast %cst_8 : f32 to vector<1x32xf32>
    %10 = arith.subf %9, %8 : vector<1x32xf32>
    %11 = math.exp %10 : vector<1x32xf32>
    %12 = math.log1p %11 : vector<1x32xf32>
    %13 = arith.addf %7, %12 : vector<1x32xf32>
    %14 = math.tanh %13 : vector<1x32xf32>
    %15 = arith.mulf %5, %14 : vector<1x32xf32>
    %16 = arith.truncf %15 : vector<1x32xf32> to vector<1x32xbf16>
    %c0_9 = arith.constant 0 : index
    %c0_10 = arith.constant 0 : index
    %17 = vector.load %arg4[%c0_9, %c0_10] : memref<32x192xbf16, #tpu.memory_space<vmem>>, vector<32x192xbf16>
    %cst_11 = arith.constant dense<0.000000e+00> : vector<1x192xf32>
    %18 = tpu.matmul %16, %17, %cst_11 {dimension_numbers = #tpu.dot_dimension_numbers<[1], [0], [0], [1], [0, 0, 1, 1], [], []>} : vector<1x32xbf16>, vector<32x192xbf16>, vector<1x192xf32> -> vector<1x192xf32>
    %c0_12 = arith.constant 0 : index
    %c0_13 = arith.constant 0 : index
    %19 = vector.load %arg5[%c0_12, %c0_13] : memref<1x192xf32, #tpu.memory_space<vmem>>, vector<1x192xf32>
    %20 = arith.addf %18, %19 : vector<1x192xf32>
    %c0_14 = arith.constant 0 : index
    %c0_15 = arith.constant 0 : index
    %21 = vector.load %arg6[%c0_14, %c0_15] : memref<3x32xf32, #tpu.memory_space<vmem>>, vector<3x32xf32>
    %c0_16 = arith.constant 0 : index
    %c0_17 = arith.constant 0 : index
    %22 = vector.load %arg7[%c0_16, %c0_17] : memref<3x32xf32, #tpu.memory_space<vmem>>, vector<3x32xf32>
    %23 = vector.extract_strided_slice %21 {offsets = [0, 0], sizes = [1, 32], strides = [1, 1]} : vector<3x32xf32> to vector<1x32xf32>
    %24 = vector.extract_strided_slice %22 {offsets = [0, 0], sizes = [1, 32], strides = [1, 1]} : vector<3x32xf32> to vector<1x32xf32>
    %cst_18 = arith.constant dense<0.000000e+00> : vector<8xf32>
    %25 = vector.multi_reduction <add>, %1, %cst_18 [1] : vector<8x32xf32> to vector<8xf32>
    %26 = vector.shape_cast %25 : vector<8xf32> to vector<8x1xf32>
    %cst_19 = arith.constant 3.200000e+01 : f32
    %27 = vector.broadcast %cst_19 : f32 to vector<8x1xf32>
    %28 = arith.divf %26, %27 : vector<8x1xf32>
    %29 = vector.broadcast %28 : vector<8x1xf32> to vector<8x32xf32>
    %30 = arith.subf %1, %29 : vector<8x32xf32>
    %31 = arith.mulf %30, %30 : vector<8x32xf32>
    %cst_20 = arith.constant dense<0.000000e+00> : vector<8xf32>
    %32 = vector.multi_reduction <add>, %31, %cst_20 [1] : vector<8x32xf32> to vector<8xf32>
    %33 = vector.shape_cast %32 : vector<8xf32> to vector<8x1xf32>
    %cst_21 = arith.constant 3.200000e+01 : f32
    %34 = vector.broadcast %cst_21 : f32 to vector<8x1xf32>
    %35 = arith.divf %33, %34 : vector<8x1xf32>
    %36 = vector.broadcast %28 : vector<8x1xf32> to vector<8x32xf32>
    %37 = arith.subf %1, %36 : vector<8x32xf32>
    %cst_22 = arith.constant 9.99999974E-6 : f32
    %38 = vector.broadcast %cst_22 : f32 to vector<8x1xf32>
    %39 = arith.addf %35, %38 : vector<8x1xf32>
    %40 = math.rsqrt %39 : vector<8x1xf32>
    %41 = vector.broadcast %40 : vector<8x1xf32> to vector<8x32xf32>
    %42 = arith.mulf %37, %41 : vector<8x32xf32>
    %43 = vector.broadcast %23 : vector<1x32xf32> to vector<8x32xf32>
    %44 = arith.mulf %42, %43 : vector<8x32xf32>
    %45 = vector.broadcast %24 : vector<1x32xf32> to vector<8x32xf32>
    %46 = arith.addf %44, %45 : vector<8x32xf32>
    %47 = arith.truncf %46 : vector<8x32xf32> to vector<8x32xbf16>
    %c0_23 = arith.constant 0 : index
    %c0_24 = arith.constant 0 : index
    %48 = vector.load %arg8[%c0_23, %c0_24] : memref<32x96xbf16, #tpu.memory_space<vmem>>, vector<32x96xbf16>
    %cst_25 = arith.constant dense<0.000000e+00> : vector<8x96xf32>
    %49 = tpu.matmul %47, %48, %cst_25 {dimension_numbers = #tpu.dot_dimension_numbers<[1], [0], [0], [1], [0, 0, 1, 1], [], []>} : vector<8x32xbf16>, vector<32x96xbf16>, vector<8x96xf32> -> vector<8x96xf32>
    %c0_26 = arith.constant 0 : index
    %c0_27 = arith.constant 0 : index
    %50 = vector.load %arg9[%c0_26, %c0_27] : memref<1x96xf32, #tpu.memory_space<vmem>>, vector<1x96xf32>
    %51 = vector.broadcast %50 : vector<1x96xf32> to vector<8x96xf32>
    %52 = arith.addf %49, %51 : vector<8x96xf32>
    %53 = vector.extract_strided_slice %52 {offsets = [0, 0], sizes = [8, 32], strides = [1, 1]} : vector<8x96xf32> to vector<8x32xf32>
    %54 = arith.truncf %53 : vector<8x32xf32> to vector<8x32xbf16>
    %55 = vector.extract_strided_slice %52 {offsets = [0, 32], sizes = [8, 32], strides = [1, 1]} : vector<8x96xf32> to vector<8x32xf32>
    %56 = tpu.transpose %55, [1, 0] : vector<8x32xf32> -> vector<32x8xf32>
    %57 = arith.truncf %56 : vector<32x8xf32> to vector<32x8xbf16>
    %58 = vector.extract_strided_slice %52 {offsets = [0, 64], sizes = [8, 32], strides = [1, 1]} : vector<8x96xf32> to vector<8x32xf32>
    %59 = arith.truncf %58 : vector<8x32xf32> to vector<8x32xbf16>
    %cst_28 = arith.constant 0.000000e+00 : f32
    %60 = vector.broadcast %cst_28 : f32 to vector<8x32xf32>
    %61 = vector.extract_strided_slice %54 {offsets = [0, 0], sizes = [8, 8], strides = [1, 1]} : vector<8x32xbf16> to vector<8x8xbf16>
    %62 = vector.extract_strided_slice %57 {offsets = [0, 0], sizes = [8, 8], strides = [1, 1]} : vector<32x8xbf16> to vector<8x8xbf16>
    %63 = vector.extract_strided_slice %59 {offsets = [0, 0], sizes = [8, 8], strides = [1, 1]} : vector<8x32xbf16> to vector<8x8xbf16>
    %cst_29 = arith.constant dense<0.000000e+00> : vector<8x8xf32>
    %64 = tpu.matmul %61, %62, %cst_29 {dimension_numbers = #tpu.dot_dimension_numbers<[1], [0], [0], [1], [0, 0, 1, 1], [], []>} : vector<8x8xbf16>, vector<8x8xbf16>, vector<8x8xf32> -> vector<8x8xf32>
    %cst_30 = arith.constant 0.353553385 : f32
    %65 = vector.broadcast %cst_30 : f32 to vector<8x8xf32>
    %66 = arith.mulf %64, %65 : vector<8x8xf32>
    %cst_31 = arith.constant dense<0xFF800000> : vector<8xf32>
    %67 = vector.multi_reduction <maximumf>, %66, %cst_31 [1] : vector<8x8xf32> to vector<8xf32>
    %68 = vector.shape_cast %67 : vector<8xf32> to vector<8x1xf32>
    %69 = vector.broadcast %68 : vector<8x1xf32> to vector<8x8xf32>
    %70 = arith.subf %66, %69 : vector<8x8xf32>
    %71 = math.exp %70 : vector<8x8xf32>
    %cst_32 = arith.constant dense<0.000000e+00> : vector<8xf32>
    %72 = vector.multi_reduction <add>, %71, %cst_32 [1] : vector<8x8xf32> to vector<8xf32>
    %73 = vector.shape_cast %72 : vector<8xf32> to vector<8x1xf32>
    %74 = tpu.reciprocal %73 {approx = true} : vector<8x1xf32> -> vector<8x1xf32>
    %75 = vector.broadcast %74 : vector<8x1xf32> to vector<8x8xf32>
    %76 = arith.mulf %71, %75 : vector<8x8xf32>
    %77 = arith.truncf %76 : vector<8x8xf32> to vector<8x8xbf16>
    %cst_33 = arith.constant dense<0.000000e+00> : vector<8x8xf32>
    %78 = tpu.matmul %77, %63, %cst_33 {dimension_numbers = #tpu.dot_dimension_numbers<[1], [0], [0], [1], [0, 0, 1, 1], [], []>} : vector<8x8xbf16>, vector<8x8xbf16>, vector<8x8xf32> -> vector<8x8xf32>
    %79 = arith.truncf %78 : vector<8x8xf32> to vector<8x8xbf16>
    %c0_34 = arith.constant 0 : index
    %c0_35 = arith.constant 0 : index
    %80 = vector.load %arg10[%c0_34, %c0_35] : memref<32x32xbf16, #tpu.memory_space<vmem>>, vector<8x32xbf16>
    %cst_36 = arith.constant dense<0.000000e+00> : vector<8x32xf32>
    %81 = tpu.matmul %79, %80, %cst_36 {dimension_numbers = #tpu.dot_dimension_numbers<[1], [0], [0], [1], [0, 0, 1, 1], [], []>} : vector<8x8xbf16>, vector<8x32xbf16>, vector<8x32xf32> -> vector<8x32xf32>
    %82 = arith.addf %60, %81 : vector<8x32xf32>
    %83 = vector.extract_strided_slice %54 {offsets = [0, 8], sizes = [8, 8], strides = [1, 1]} : vector<8x32xbf16> to vector<8x8xbf16>
    %84 = vector.extract_strided_slice %57 {offsets = [8, 0], sizes = [8, 8], strides = [1, 1]} : vector<32x8xbf16> to vector<8x8xbf16>
    %85 = vector.extract_strided_slice %59 {offsets = [0, 8], sizes = [8, 8], strides = [1, 1]} : vector<8x32xbf16> to vector<8x8xbf16>
    %cst_37 = arith.constant dense<0.000000e+00> : vector<8x8xf32>
    %86 = tpu.matmul %83, %84, %cst_37 {dimension_numbers = #tpu.dot_dimension_numbers<[1], [0], [0], [1], [0, 0, 1, 1], [], []>} : vector<8x8xbf16>, vector<8x8xbf16>, vector<8x8xf32> -> vector<8x8xf32>
    %cst_38 = arith.constant 0.353553385 : f32
    %87 = vector.broadcast %cst_38 : f32 to vector<8x8xf32>
    %88 = arith.mulf %86, %87 : vector<8x8xf32>
    %cst_39 = arith.constant dense<0xFF800000> : vector<8xf32>
    %89 = vector.multi_reduction <maximumf>, %88, %cst_39 [1] : vector<8x8xf32> to vector<8xf32>
    %90 = vector.shape_cast %89 : vector<8xf32> to vector<8x1xf32>
    %91 = vector.broadcast %90 : vector<8x1xf32> to vector<8x8xf32>
    %92 = arith.subf %88, %91 : vector<8x8xf32>
    %93 = math.exp %92 : vector<8x8xf32>
    %cst_40 = arith.constant dense<0.000000e+00> : vector<8xf32>
    %94 = vector.multi_reduction <add>, %93, %cst_40 [1] : vector<8x8xf32> to vector<8xf32>
    %95 = vector.shape_cast %94 : vector<8xf32> to vector<8x1xf32>
    %96 = tpu.reciprocal %95 {approx = true} : vector<8x1xf32> -> vector<8x1xf32>
    %97 = vector.broadcast %96 : vector<8x1xf32> to vector<8x8xf32>
    %98 = arith.mulf %93, %97 : vector<8x8xf32>
    %99 = arith.truncf %98 : vector<8x8xf32> to vector<8x8xbf16>
    %cst_41 = arith.constant dense<0.000000e+00> : vector<8x8xf32>
    %100 = tpu.matmul %99, %85, %cst_41 {dimension_numbers = #tpu.dot_dimension_numbers<[1], [0], [0], [1], [0, 0, 1, 1], [], []>} : vector<8x8xbf16>, vector<8x8xbf16>, vector<8x8xf32> -> vector<8x8xf32>
    %101 = arith.truncf %100 : vector<8x8xf32> to vector<8x8xbf16>
    %c8 = arith.constant 8 : index
    %c0_42 = arith.constant 0 : index
    %102 = vector.load %arg10[%c8, %c0_42] : memref<32x32xbf16, #tpu.memory_space<vmem>>, vector<8x32xbf16>
    %cst_43 = arith.constant dense<0.000000e+00> : vector<8x32xf32>
    %103 = tpu.matmul %101, %102, %cst_43 {dimension_numbers = #tpu.dot_dimension_numbers<[1], [0], [0], [1], [0, 0, 1, 1], [], []>} : vector<8x8xbf16>, vector<8x32xbf16>, vector<8x32xf32> -> vector<8x32xf32>
    %104 = arith.addf %82, %103 : vector<8x32xf32>
    %105 = vector.extract_strided_slice %54 {offsets = [0, 16], sizes = [8, 8], strides = [1, 1]} : vector<8x32xbf16> to vector<8x8xbf16>
    %106 = vector.extract_strided_slice %57 {offsets = [16, 0], sizes = [8, 8], strides = [1, 1]} : vector<32x8xbf16> to vector<8x8xbf16>
    %107 = vector.extract_strided_slice %59 {offsets = [0, 16], sizes = [8, 8], strides = [1, 1]} : vector<8x32xbf16> to vector<8x8xbf16>
    %cst_44 = arith.constant dense<0.000000e+00> : vector<8x8xf32>
    %108 = tpu.matmul %105, %106, %cst_44 {dimension_numbers = #tpu.dot_dimension_numbers<[1], [0], [0], [1], [0, 0, 1, 1], [], []>} : vector<8x8xbf16>, vector<8x8xbf16>, vector<8x8xf32> -> vector<8x8xf32>
    %cst_45 = arith.constant 0.353553385 : f32
    %109 = vector.broadcast %cst_45 : f32 to vector<8x8xf32>
    %110 = arith.mulf %108, %109 : vector<8x8xf32>
    %cst_46 = arith.constant dense<0xFF800000> : vector<8xf32>
    %111 = vector.multi_reduction <maximumf>, %110, %cst_46 [1] : vector<8x8xf32> to vector<8xf32>
    %112 = vector.shape_cast %111 : vector<8xf32> to vector<8x1xf32>
    %113 = vector.broadcast %112 : vector<8x1xf32> to vector<8x8xf32>
    %114 = arith.subf %110, %113 : vector<8x8xf32>
    %115 = math.exp %114 : vector<8x8xf32>
    %cst_47 = arith.constant dense<0.000000e+00> : vector<8xf32>
    %116 = vector.multi_reduction <add>, %115, %cst_47 [1] : vector<8x8xf32> to vector<8xf32>
    %117 = vector.shape_cast %116 : vector<8xf32> to vector<8x1xf32>
    %118 = tpu.reciprocal %117 {approx = true} : vector<8x1xf32> -> vector<8x1xf32>
    %119 = vector.broadcast %118 : vector<8x1xf32> to vector<8x8xf32>
    %120 = arith.mulf %115, %119 : vector<8x8xf32>
    %121 = arith.truncf %120 : vector<8x8xf32> to vector<8x8xbf16>
    %cst_48 = arith.constant dense<0.000000e+00> : vector<8x8xf32>
    %122 = tpu.matmul %121, %107, %cst_48 {dimension_numbers = #tpu.dot_dimension_numbers<[1], [0], [0], [1], [0, 0, 1, 1], [], []>} : vector<8x8xbf16>, vector<8x8xbf16>, vector<8x8xf32> -> vector<8x8xf32>
    %123 = arith.truncf %122 : vector<8x8xf32> to vector<8x8xbf16>
    %c16 = arith.constant 16 : index
    %c0_49 = arith.constant 0 : index
    %124 = vector.load %arg10[%c16, %c0_49] : memref<32x32xbf16, #tpu.memory_space<vmem>>, vector<8x32xbf16>
    %cst_50 = arith.constant dense<0.000000e+00> : vector<8x32xf32>
    %125 = tpu.matmul %123, %124, %cst_50 {dimension_numbers = #tpu.dot_dimension_numbers<[1], [0], [0], [1], [0, 0, 1, 1], [], []>} : vector<8x8xbf16>, vector<8x32xbf16>, vector<8x32xf32> -> vector<8x32xf32>
    %126 = arith.addf %104, %125 : vector<8x32xf32>
    %127 = vector.extract_strided_slice %54 {offsets = [0, 24], sizes = [8, 8], strides = [1, 1]} : vector<8x32xbf16> to vector<8x8xbf16>
    %128 = vector.extract_strided_slice %57 {offsets = [24, 0], sizes = [8, 8], strides = [1, 1]} : vector<32x8xbf16> to vector<8x8xbf16>
    %129 = vector.extract_strided_slice %59 {offsets = [0, 24], sizes = [8, 8], strides = [1, 1]} : vector<8x32xbf16> to vector<8x8xbf16>
    %cst_51 = arith.constant dense<0.000000e+00> : vector<8x8xf32>
    %130 = tpu.matmul %127, %128, %cst_51 {dimension_numbers = #tpu.dot_dimension_numbers<[1], [0], [0], [1], [0, 0, 1, 1], [], []>} : vector<8x8xbf16>, vector<8x8xbf16>, vector<8x8xf32> -> vector<8x8xf32>
    %cst_52 = arith.constant 0.353553385 : f32
    %131 = vector.broadcast %cst_52 : f32 to vector<8x8xf32>
    %132 = arith.mulf %130, %131 : vector<8x8xf32>
    %cst_53 = arith.constant dense<0xFF800000> : vector<8xf32>
    %133 = vector.multi_reduction <maximumf>, %132, %cst_53 [1] : vector<8x8xf32> to vector<8xf32>
    %134 = vector.shape_cast %133 : vector<8xf32> to vector<8x1xf32>
    %135 = vector.broadcast %134 : vector<8x1xf32> to vector<8x8xf32>
    %136 = arith.subf %132, %135 : vector<8x8xf32>
    %137 = math.exp %136 : vector<8x8xf32>
    %cst_54 = arith.constant dense<0.000000e+00> : vector<8xf32>
    %138 = vector.multi_reduction <add>, %137, %cst_54 [1] : vector<8x8xf32> to vector<8xf32>
    %139 = vector.shape_cast %138 : vector<8xf32> to vector<8x1xf32>
    %140 = tpu.reciprocal %139 {approx = true} : vector<8x1xf32> -> vector<8x1xf32>
    %141 = vector.broadcast %140 : vector<8x1xf32> to vector<8x8xf32>
    %142 = arith.mulf %137, %141 : vector<8x8xf32>
    %143 = arith.truncf %142 : vector<8x8xf32> to vector<8x8xbf16>
    %cst_55 = arith.constant dense<0.000000e+00> : vector<8x8xf32>
    %144 = tpu.matmul %143, %129, %cst_55 {dimension_numbers = #tpu.dot_dimension_numbers<[1], [0], [0], [1], [0, 0, 1, 1], [], []>} : vector<8x8xbf16>, vector<8x8xbf16>, vector<8x8xf32> -> vector<8x8xf32>
    %145 = arith.truncf %144 : vector<8x8xf32> to vector<8x8xbf16>
    %c24 = arith.constant 24 : index
    %c0_56 = arith.constant 0 : index
    %146 = vector.load %arg10[%c24, %c0_56] : memref<32x32xbf16, #tpu.memory_space<vmem>>, vector<8x32xbf16>
    %cst_57 = arith.constant dense<0.000000e+00> : vector<8x32xf32>
    %147 = tpu.matmul %145, %146, %cst_57 {dimension_numbers = #tpu.dot_dimension_numbers<[1], [0], [0], [1], [0, 0, 1, 1], [], []>} : vector<8x8xbf16>, vector<8x32xbf16>, vector<8x32xf32> -> vector<8x32xf32>
    %148 = arith.addf %126, %147 : vector<8x32xf32>
    %c0_58 = arith.constant 0 : index
    %c0_59 = arith.constant 0 : index
    %149 = vector.load %arg11[%c0_58, %c0_59] : memref<1x32xf32, #tpu.memory_space<vmem>>, vector<1x32xf32>
    %150 = vector.broadcast %149 : vector<1x32xf32> to vector<8x32xf32>
    %151 = arith.addf %148, %150 : vector<8x32xf32>
    %152 = vector.extract_strided_slice %20 {offsets = [0, 0], sizes = [1, 32], strides = [1, 1]} : vector<1x192xf32> to vector<1x32xf32>
    %153 = vector.extract_strided_slice %20 {offsets = [0, 32], sizes = [1, 32], strides = [1, 1]} : vector<1x192xf32> to vector<1x32xf32>
    %cst_60 = arith.constant 1.000000e+00 : f32
    %154 = vector.broadcast %cst_60 : f32 to vector<1x32xf32>
    %155 = arith.addf %152, %154 : vector<1x32xf32>
    %156 = vector.broadcast %155 : vector<1x32xf32> to vector<8x32xf32>
    %157 = arith.mulf %156, %151 : vector<8x32xf32>
    %158 = vector.broadcast %153 : vector<1x32xf32> to vector<8x32xf32>
    %159 = arith.addf %157, %158 : vector<8x32xf32>
    %160 = arith.addf %1, %159 : vector<8x32xf32>
    %161 = vector.extract_strided_slice %21 {offsets = [1, 0], sizes = [1, 32], strides = [1, 1]} : vector<3x32xf32> to vector<1x32xf32>
    %162 = vector.extract_strided_slice %22 {offsets = [1, 0], sizes = [1, 32], strides = [1, 1]} : vector<3x32xf32> to vector<1x32xf32>
    %cst_61 = arith.constant dense<0.000000e+00> : vector<8xf32>
    %163 = vector.multi_reduction <add>, %160, %cst_61 [1] : vector<8x32xf32> to vector<8xf32>
    %164 = vector.shape_cast %163 : vector<8xf32> to vector<8x1xf32>
    %cst_62 = arith.constant 3.200000e+01 : f32
    %165 = vector.broadcast %cst_62 : f32 to vector<8x1xf32>
    %166 = arith.divf %164, %165 : vector<8x1xf32>
    %167 = vector.broadcast %166 : vector<8x1xf32> to vector<8x32xf32>
    %168 = arith.subf %160, %167 : vector<8x32xf32>
    %169 = arith.mulf %168, %168 : vector<8x32xf32>
    %cst_63 = arith.constant dense<0.000000e+00> : vector<8xf32>
    %170 = vector.multi_reduction <add>, %169, %cst_63 [1] : vector<8x32xf32> to vector<8xf32>
    %171 = vector.shape_cast %170 : vector<8xf32> to vector<8x1xf32>
    %cst_64 = arith.constant 3.200000e+01 : f32
    %172 = vector.broadcast %cst_64 : f32 to vector<8x1xf32>
    %173 = arith.divf %171, %172 : vector<8x1xf32>
    %174 = vector.broadcast %166 : vector<8x1xf32> to vector<8x32xf32>
    %175 = arith.subf %160, %174 : vector<8x32xf32>
    %cst_65 = arith.constant 9.99999974E-6 : f32
    %176 = vector.broadcast %cst_65 : f32 to vector<8x1xf32>
    %177 = arith.addf %173, %176 : vector<8x1xf32>
    %178 = math.rsqrt %177 : vector<8x1xf32>
    %179 = vector.broadcast %178 : vector<8x1xf32> to vector<8x32xf32>
    %180 = arith.mulf %175, %179 : vector<8x32xf32>
    %181 = vector.broadcast %161 : vector<1x32xf32> to vector<8x32xf32>
    %182 = arith.mulf %180, %181 : vector<8x32xf32>
    %183 = vector.broadcast %162 : vector<1x32xf32> to vector<8x32xf32>
    %184 = arith.addf %182, %183 : vector<8x32xf32>
    %185 = arith.truncf %184 : vector<8x32xf32> to vector<8x32xbf16>
    %c0_66 = arith.constant 0 : index
    %c0_67 = arith.constant 0 : index
    %186 = vector.load %arg12[%c0_66, %c0_67] : memref<32x32xbf16, #tpu.memory_space<vmem>>, vector<32x32xbf16>
    %cst_68 = arith.constant dense<0.000000e+00> : vector<8x32xf32>
    %187 = tpu.matmul %185, %186, %cst_68 {dimension_numbers = #tpu.dot_dimension_numbers<[1], [0], [0], [1], [0, 0, 1, 1], [], []>} : vector<8x32xbf16>, vector<32x32xbf16>, vector<8x32xf32> -> vector<8x32xf32>
    %c0_69 = arith.constant 0 : index
    %c0_70 = arith.constant 0 : index
    %188 = vector.load %arg13[%c0_69, %c0_70] : memref<1x32xf32, #tpu.memory_space<vmem>>, vector<1x32xf32>
    %189 = vector.broadcast %188 : vector<1x32xf32> to vector<8x32xf32>
    %190 = arith.addf %187, %189 : vector<8x32xf32>
    %191 = arith.truncf %190 : vector<8x32xf32> to vector<8x32xbf16>
    %192 = arith.truncf %3 : vector<8x32xf32> to vector<8x32xbf16>
    %c0_71 = arith.constant 0 : index
    %c0_72 = arith.constant 0 : index
    %193 = vector.load %arg14[%c0_71, %c0_72] : memref<32x64xbf16, #tpu.memory_space<vmem>>, vector<32x64xbf16>
    %cst_73 = arith.constant dense<0.000000e+00> : vector<8x64xf32>
    %194 = tpu.matmul %192, %193, %cst_73 {dimension_numbers = #tpu.dot_dimension_numbers<[1], [0], [0], [1], [0, 0, 1, 1], [], []>} : vector<8x32xbf16>, vector<32x64xbf16>, vector<8x64xf32> -> vector<8x64xf32>
    %c0_74 = arith.constant 0 : index
    %c0_75 = arith.constant 0 : index
    %195 = vector.load %arg15[%c0_74, %c0_75] : memref<1x64xf32, #tpu.memory_space<vmem>>, vector<1x64xf32>
    %196 = vector.broadcast %195 : vector<1x64xf32> to vector<8x64xf32>
    %197 = arith.addf %194, %196 : vector<8x64xf32>
    %198 = vector.extract_strided_slice %197 {offsets = [0, 0], sizes = [8, 32], strides = [1, 1]} : vector<8x64xf32> to vector<8x32xf32>
    %199 = tpu.transpose %198, [1, 0] : vector<8x32xf32> -> vector<32x8xf32>
    %200 = arith.truncf %199 : vector<32x8xf32> to vector<32x8xbf16>
    %201 = vector.extract_strided_slice %197 {offsets = [0, 32], sizes = [8, 32], strides = [1, 1]} : vector<8x64xf32> to vector<8x32xf32>
    %202 = arith.truncf %201 : vector<8x32xf32> to vector<8x32xbf16>
    %cst_76 = arith.constant 0.000000e+00 : f32
    %203 = vector.broadcast %cst_76 : f32 to vector<8x32xf32>
    %204 = vector.extract_strided_slice %191 {offsets = [0, 0], sizes = [8, 8], strides = [1, 1]} : vector<8x32xbf16> to vector<8x8xbf16>
    %205 = vector.extract_strided_slice %200 {offsets = [0, 0], sizes = [8, 8], strides = [1, 1]} : vector<32x8xbf16> to vector<8x8xbf16>
    %206 = vector.extract_strided_slice %202 {offsets = [0, 0], sizes = [8, 8], strides = [1, 1]} : vector<8x32xbf16> to vector<8x8xbf16>
    %cst_77 = arith.constant dense<0.000000e+00> : vector<8x8xf32>
    %207 = tpu.matmul %204, %205, %cst_77 {dimension_numbers = #tpu.dot_dimension_numbers<[1], [0], [0], [1], [0, 0, 1, 1], [], []>} : vector<8x8xbf16>, vector<8x8xbf16>, vector<8x8xf32> -> vector<8x8xf32>
    %cst_78 = arith.constant 0.353553385 : f32
    %208 = vector.broadcast %cst_78 : f32 to vector<8x8xf32>
    %209 = arith.mulf %207, %208 : vector<8x8xf32>
    %cst_79 = arith.constant dense<0xFF800000> : vector<8xf32>
    %210 = vector.multi_reduction <maximumf>, %209, %cst_79 [1] : vector<8x8xf32> to vector<8xf32>
    %211 = vector.shape_cast %210 : vector<8xf32> to vector<8x1xf32>
    %212 = vector.broadcast %211 : vector<8x1xf32> to vector<8x8xf32>
    %213 = arith.subf %209, %212 : vector<8x8xf32>
    %214 = math.exp %213 : vector<8x8xf32>
    %cst_80 = arith.constant dense<0.000000e+00> : vector<8xf32>
    %215 = vector.multi_reduction <add>, %214, %cst_80 [1] : vector<8x8xf32> to vector<8xf32>
    %216 = vector.shape_cast %215 : vector<8xf32> to vector<8x1xf32>
    %217 = tpu.reciprocal %216 {approx = true} : vector<8x1xf32> -> vector<8x1xf32>
    %218 = vector.broadcast %217 : vector<8x1xf32> to vector<8x8xf32>
    %219 = arith.mulf %214, %218 : vector<8x8xf32>
    %220 = arith.truncf %219 : vector<8x8xf32> to vector<8x8xbf16>
    %cst_81 = arith.constant dense<0.000000e+00> : vector<8x8xf32>
    %221 = tpu.matmul %220, %206, %cst_81 {dimension_numbers = #tpu.dot_dimension_numbers<[1], [0], [0], [1], [0, 0, 1, 1], [], []>} : vector<8x8xbf16>, vector<8x8xbf16>, vector<8x8xf32> -> vector<8x8xf32>
    %222 = arith.truncf %221 : vector<8x8xf32> to vector<8x8xbf16>
    %c0_82 = arith.constant 0 : index
    %c0_83 = arith.constant 0 : index
    %223 = vector.load %arg16[%c0_82, %c0_83] : memref<32x32xbf16, #tpu.memory_space<vmem>>, vector<8x32xbf16>
    %cst_84 = arith.constant dense<0.000000e+00> : vector<8x32xf32>
    %224 = tpu.matmul %222, %223, %cst_84 {dimension_numbers = #tpu.dot_dimension_numbers<[1], [0], [0], [1], [0, 0, 1, 1], [], []>} : vector<8x8xbf16>, vector<8x32xbf16>, vector<8x32xf32> -> vector<8x32xf32>
    %225 = arith.addf %203, %224 : vector<8x32xf32>
    %226 = vector.extract_strided_slice %191 {offsets = [0, 8], sizes = [8, 8], strides = [1, 1]} : vector<8x32xbf16> to vector<8x8xbf16>
    %227 = vector.extract_strided_slice %200 {offsets = [8, 0], sizes = [8, 8], strides = [1, 1]} : vector<32x8xbf16> to vector<8x8xbf16>
    %228 = vector.extract_strided_slice %202 {offsets = [0, 8], sizes = [8, 8], strides = [1, 1]} : vector<8x32xbf16> to vector<8x8xbf16>
    %cst_85 = arith.constant dense<0.000000e+00> : vector<8x8xf32>
    %229 = tpu.matmul %226, %227, %cst_85 {dimension_numbers = #tpu.dot_dimension_numbers<[1], [0], [0], [1], [0, 0, 1, 1], [], []>} : vector<8x8xbf16>, vector<8x8xbf16>, vector<8x8xf32> -> vector<8x8xf32>
    %cst_86 = arith.constant 0.353553385 : f32
    %230 = vector.broadcast %cst_86 : f32 to vector<8x8xf32>
    %231 = arith.mulf %229, %230 : vector<8x8xf32>
    %cst_87 = arith.constant dense<0xFF800000> : vector<8xf32>
    %232 = vector.multi_reduction <maximumf>, %231, %cst_87 [1] : vector<8x8xf32> to vector<8xf32>
    %233 = vector.shape_cast %232 : vector<8xf32> to vector<8x1xf32>
    %234 = vector.broadcast %233 : vector<8x1xf32> to vector<8x8xf32>
    %235 = arith.subf %231, %234 : vector<8x8xf32>
    %236 = math.exp %235 : vector<8x8xf32>
    %cst_88 = arith.constant dense<0.000000e+00> : vector<8xf32>
    %237 = vector.multi_reduction <add>, %236, %cst_88 [1] : vector<8x8xf32> to vector<8xf32>
    %238 = vector.shape_cast %237 : vector<8xf32> to vector<8x1xf32>
    %239 = tpu.reciprocal %238 {approx = true} : vector<8x1xf32> -> vector<8x1xf32>
    %240 = vector.broadcast %239 : vector<8x1xf32> to vector<8x8xf32>
    %241 = arith.mulf %236, %240 : vector<8x8xf32>
    %242 = arith.truncf %241 : vector<8x8xf32> to vector<8x8xbf16>
    %cst_89 = arith.constant dense<0.000000e+00> : vector<8x8xf32>
    %243 = tpu.matmul %242, %228, %cst_89 {dimension_numbers = #tpu.dot_dimension_numbers<[1], [0], [0], [1], [0, 0, 1, 1], [], []>} : vector<8x8xbf16>, vector<8x8xbf16>, vector<8x8xf32> -> vector<8x8xf32>
    %244 = arith.truncf %243 : vector<8x8xf32> to vector<8x8xbf16>
    %c8_90 = arith.constant 8 : index
    %c0_91 = arith.constant 0 : index
    %245 = vector.load %arg16[%c8_90, %c0_91] : memref<32x32xbf16, #tpu.memory_space<vmem>>, vector<8x32xbf16>
    %cst_92 = arith.constant dense<0.000000e+00> : vector<8x32xf32>
    %246 = tpu.matmul %244, %245, %cst_92 {dimension_numbers = #tpu.dot_dimension_numbers<[1], [0], [0], [1], [0, 0, 1, 1], [], []>} : vector<8x8xbf16>, vector<8x32xbf16>, vector<8x32xf32> -> vector<8x32xf32>
    %247 = arith.addf %225, %246 : vector<8x32xf32>
    %248 = vector.extract_strided_slice %191 {offsets = [0, 16], sizes = [8, 8], strides = [1, 1]} : vector<8x32xbf16> to vector<8x8xbf16>
    %249 = vector.extract_strided_slice %200 {offsets = [16, 0], sizes = [8, 8], strides = [1, 1]} : vector<32x8xbf16> to vector<8x8xbf16>
    %250 = vector.extract_strided_slice %202 {offsets = [0, 16], sizes = [8, 8], strides = [1, 1]} : vector<8x32xbf16> to vector<8x8xbf16>
    %cst_93 = arith.constant dense<0.000000e+00> : vector<8x8xf32>
    %251 = tpu.matmul %248, %249, %cst_93 {dimension_numbers = #tpu.dot_dimension_numbers<[1], [0], [0], [1], [0, 0, 1, 1], [], []>} : vector<8x8xbf16>, vector<8x8xbf16>, vector<8x8xf32> -> vector<8x8xf32>
    %cst_94 = arith.constant 0.353553385 : f32
    %252 = vector.broadcast %cst_94 : f32 to vector<8x8xf32>
    %253 = arith.mulf %251, %252 : vector<8x8xf32>
    %cst_95 = arith.constant dense<0xFF800000> : vector<8xf32>
    %254 = vector.multi_reduction <maximumf>, %253, %cst_95 [1] : vector<8x8xf32> to vector<8xf32>
    %255 = vector.shape_cast %254 : vector<8xf32> to vector<8x1xf32>
    %256 = vector.broadcast %255 : vector<8x1xf32> to vector<8x8xf32>
    %257 = arith.subf %253, %256 : vector<8x8xf32>
    %258 = math.exp %257 : vector<8x8xf32>
    %cst_96 = arith.constant dense<0.000000e+00> : vector<8xf32>
    %259 = vector.multi_reduction <add>, %258, %cst_96 [1] : vector<8x8xf32> to vector<8xf32>
    %260 = vector.shape_cast %259 : vector<8xf32> to vector<8x1xf32>
    %261 = tpu.reciprocal %260 {approx = true} : vector<8x1xf32> -> vector<8x1xf32>
    %262 = vector.broadcast %261 : vector<8x1xf32> to vector<8x8xf32>
    %263 = arith.mulf %258, %262 : vector<8x8xf32>
    %264 = arith.truncf %263 : vector<8x8xf32> to vector<8x8xbf16>
    %cst_97 = arith.constant dense<0.000000e+00> : vector<8x8xf32>
    %265 = tpu.matmul %264, %250, %cst_97 {dimension_numbers = #tpu.dot_dimension_numbers<[1], [0], [0], [1], [0, 0, 1, 1], [], []>} : vector<8x8xbf16>, vector<8x8xbf16>, vector<8x8xf32> -> vector<8x8xf32>
    %266 = arith.truncf %265 : vector<8x8xf32> to vector<8x8xbf16>
    %c16_98 = arith.constant 16 : index
    %c0_99 = arith.constant 0 : index
    %267 = vector.load %arg16[%c16_98, %c0_99] : memref<32x32xbf16, #tpu.memory_space<vmem>>, vector<8x32xbf16>
    %cst_100 = arith.constant dense<0.000000e+00> : vector<8x32xf32>
    %268 = tpu.matmul %266, %267, %cst_100 {dimension_numbers = #tpu.dot_dimension_numbers<[1], [0], [0], [1], [0, 0, 1, 1], [], []>} : vector<8x8xbf16>, vector<8x32xbf16>, vector<8x32xf32> -> vector<8x32xf32>
    %269 = arith.addf %247, %268 : vector<8x32xf32>
    %270 = vector.extract_strided_slice %191 {offsets = [0, 24], sizes = [8, 8], strides = [1, 1]} : vector<8x32xbf16> to vector<8x8xbf16>
    %271 = vector.extract_strided_slice %200 {offsets = [24, 0], sizes = [8, 8], strides = [1, 1]} : vector<32x8xbf16> to vector<8x8xbf16>
    %272 = vector.extract_strided_slice %202 {offsets = [0, 24], sizes = [8, 8], strides = [1, 1]} : vector<8x32xbf16> to vector<8x8xbf16>
    %cst_101 = arith.constant dense<0.000000e+00> : vector<8x8xf32>
    %273 = tpu.matmul %270, %271, %cst_101 {dimension_numbers = #tpu.dot_dimension_numbers<[1], [0], [0], [1], [0, 0, 1, 1], [], []>} : vector<8x8xbf16>, vector<8x8xbf16>, vector<8x8xf32> -> vector<8x8xf32>
    %cst_102 = arith.constant 0.353553385 : f32
    %274 = vector.broadcast %cst_102 : f32 to vector<8x8xf32>
    %275 = arith.mulf %273, %274 : vector<8x8xf32>
    %cst_103 = arith.constant dense<0xFF800000> : vector<8xf32>
    %276 = vector.multi_reduction <maximumf>, %275, %cst_103 [1] : vector<8x8xf32> to vector<8xf32>
    %277 = vector.shape_cast %276 : vector<8xf32> to vector<8x1xf32>
    %278 = vector.broadcast %277 : vector<8x1xf32> to vector<8x8xf32>
    %279 = arith.subf %275, %278 : vector<8x8xf32>
    %280 = math.exp %279 : vector<8x8xf32>
    %cst_104 = arith.constant dense<0.000000e+00> : vector<8xf32>
    %281 = vector.multi_reduction <add>, %280, %cst_104 [1] : vector<8x8xf32> to vector<8xf32>
    %282 = vector.shape_cast %281 : vector<8xf32> to vector<8x1xf32>
    %283 = tpu.reciprocal %282 {approx = true} : vector<8x1xf32> -> vector<8x1xf32>
    %284 = vector.broadcast %283 : vector<8x1xf32> to vector<8x8xf32>
    %285 = arith.mulf %280, %284 : vector<8x8xf32>
    %286 = arith.truncf %285 : vector<8x8xf32> to vector<8x8xbf16>
    %cst_105 = arith.constant dense<0.000000e+00> : vector<8x8xf32>
    %287 = tpu.matmul %286, %272, %cst_105 {dimension_numbers = #tpu.dot_dimension_numbers<[1], [0], [0], [1], [0, 0, 1, 1], [], []>} : vector<8x8xbf16>, vector<8x8xbf16>, vector<8x8xf32> -> vector<8x8xf32>
    %288 = arith.truncf %287 : vector<8x8xf32> to vector<8x8xbf16>
    %c24_106 = arith.constant 24 : index
    %c0_107 = arith.constant 0 : index
    %289 = vector.load %arg16[%c24_106, %c0_107] : memref<32x32xbf16, #tpu.memory_space<vmem>>, vector<8x32xbf16>
    %cst_108 = arith.constant dense<0.000000e+00> : vector<8x32xf32>
    %290 = tpu.matmul %288, %289, %cst_108 {dimension_numbers = #tpu.dot_dimension_numbers<[1], [0], [0], [1], [0, 0, 1, 1], [], []>} : vector<8x8xbf16>, vector<8x32xbf16>, vector<8x32xf32> -> vector<8x32xf32>
    %291 = arith.addf %269, %290 : vector<8x32xf32>
    %c0_109 = arith.constant 0 : index
    %c0_110 = arith.constant 0 : index
    %292 = vector.load %arg17[%c0_109, %c0_110] : memref<1x32xf32, #tpu.memory_space<vmem>>, vector<1x32xf32>
    %293 = vector.broadcast %292 : vector<1x32xf32> to vector<8x32xf32>
    %294 = arith.addf %291, %293 : vector<8x32xf32>
    %295 = vector.extract_strided_slice %20 {offsets = [0, 64], sizes = [1, 32], strides = [1, 1]} : vector<1x192xf32> to vector<1x32xf32>
    %296 = vector.extract_strided_slice %20 {offsets = [0, 96], sizes = [1, 32], strides = [1, 1]} : vector<1x192xf32> to vector<1x32xf32>
    %cst_111 = arith.constant 1.000000e+00 : f32
    %297 = vector.broadcast %cst_111 : f32 to vector<1x32xf32>
    %298 = arith.addf %295, %297 : vector<1x32xf32>
    %299 = vector.broadcast %298 : vector<1x32xf32> to vector<8x32xf32>
    %300 = arith.mulf %299, %294 : vector<8x32xf32>
    %301 = vector.broadcast %296 : vector<1x32xf32> to vector<8x32xf32>
    %302 = arith.addf %300, %301 : vector<8x32xf32>
    %303 = arith.addf %160, %302 : vector<8x32xf32>
    %304 = vector.extract_strided_slice %21 {offsets = [2, 0], sizes = [1, 32], strides = [1, 1]} : vector<3x32xf32> to vector<1x32xf32>
    %305 = vector.extract_strided_slice %22 {offsets = [2, 0], sizes = [1, 32], strides = [1, 1]} : vector<3x32xf32> to vector<1x32xf32>
    %cst_112 = arith.constant dense<0.000000e+00> : vector<8xf32>
    %306 = vector.multi_reduction <add>, %303, %cst_112 [1] : vector<8x32xf32> to vector<8xf32>
    %307 = vector.shape_cast %306 : vector<8xf32> to vector<8x1xf32>
    %cst_113 = arith.constant 3.200000e+01 : f32
    %308 = vector.broadcast %cst_113 : f32 to vector<8x1xf32>
    %309 = arith.divf %307, %308 : vector<8x1xf32>
    %310 = vector.broadcast %309 : vector<8x1xf32> to vector<8x32xf32>
    %311 = arith.subf %303, %310 : vector<8x32xf32>
    %312 = arith.mulf %311, %311 : vector<8x32xf32>
    %cst_114 = arith.constant dense<0.000000e+00> : vector<8xf32>
    %313 = vector.multi_reduction <add>, %312, %cst_114 [1] : vector<8x32xf32> to vector<8xf32>
    %314 = vector.shape_cast %313 : vector<8xf32> to vector<8x1xf32>
    %cst_115 = arith.constant 3.200000e+01 : f32
    %315 = vector.broadcast %cst_115 : f32 to vector<8x1xf32>
    %316 = arith.divf %314, %315 : vector<8x1xf32>
    %317 = vector.broadcast %309 : vector<8x1xf32> to vector<8x32xf32>
    %318 = arith.subf %303, %317 : vector<8x32xf32>
    %cst_116 = arith.constant 9.99999974E-6 : f32
    %319 = vector.broadcast %cst_116 : f32 to vector<8x1xf32>
    %320 = arith.addf %316, %319 : vector<8x1xf32>
    %321 = math.rsqrt %320 : vector<8x1xf32>
    %322 = vector.broadcast %321 : vector<8x1xf32> to vector<8x32xf32>
    %323 = arith.mulf %318, %322 : vector<8x32xf32>
    %324 = vector.broadcast %304 : vector<1x32xf32> to vector<8x32xf32>
    %325 = arith.mulf %323, %324 : vector<8x32xf32>
    %326 = vector.broadcast %305 : vector<1x32xf32> to vector<8x32xf32>
    %327 = arith.addf %325, %326 : vector<8x32xf32>
    %328 = arith.truncf %327 : vector<8x32xf32> to vector<8x32xbf16>
    %c0_117 = arith.constant 0 : index
    %c0_118 = arith.constant 0 : index
    %329 = vector.load %arg18[%c0_117, %c0_118] : memref<32x64xbf16, #tpu.memory_space<vmem>>, vector<32x64xbf16>
    %cst_119 = arith.constant dense<0.000000e+00> : vector<8x64xf32>
    %330 = tpu.matmul %328, %329, %cst_119 {dimension_numbers = #tpu.dot_dimension_numbers<[1], [0], [0], [1], [0, 0, 1, 1], [], []>} : vector<8x32xbf16>, vector<32x64xbf16>, vector<8x64xf32> -> vector<8x64xf32>
    %c0_120 = arith.constant 0 : index
    %c0_121 = arith.constant 0 : index
    %331 = vector.load %arg19[%c0_120, %c0_121] : memref<1x64xf32, #tpu.memory_space<vmem>>, vector<1x64xf32>
    %332 = vector.broadcast %331 : vector<1x64xf32> to vector<8x64xf32>
    %333 = arith.addf %330, %332 : vector<8x64xf32>
    %cst_122 = arith.constant 0.000000e+00 : f32
    %334 = vector.broadcast %cst_122 : f32 to vector<8x64xf32>
    %335 = arith.maximumf %333, %334 : vector<8x64xf32>
    %336 = arith.truncf %335 : vector<8x64xf32> to vector<8x64xbf16>
    %c0_123 = arith.constant 0 : index
    %c0_124 = arith.constant 0 : index
    %337 = vector.load %arg20[%c0_123, %c0_124] : memref<64x32xbf16, #tpu.memory_space<vmem>>, vector<64x32xbf16>
    %cst_125 = arith.constant dense<0.000000e+00> : vector<8x32xf32>
    %338 = tpu.matmul %336, %337, %cst_125 {dimension_numbers = #tpu.dot_dimension_numbers<[1], [0], [0], [1], [0, 0, 1, 1], [], []>} : vector<8x64xbf16>, vector<64x32xbf16>, vector<8x32xf32> -> vector<8x32xf32>
    %c0_126 = arith.constant 0 : index
    %c0_127 = arith.constant 0 : index
    %339 = vector.load %arg21[%c0_126, %c0_127] : memref<1x32xf32, #tpu.memory_space<vmem>>, vector<1x32xf32>
    %340 = vector.broadcast %339 : vector<1x32xf32> to vector<8x32xf32>
    %341 = arith.addf %338, %340 : vector<8x32xf32>
    %342 = vector.extract_strided_slice %20 {offsets = [0, 128], sizes = [1, 32], strides = [1, 1]} : vector<1x192xf32> to vector<1x32xf32>
    %343 = vector.extract_strided_slice %20 {offsets = [0, 160], sizes = [1, 32], strides = [1, 1]} : vector<1x192xf32> to vector<1x32xf32>
    %cst_128 = arith.constant 1.000000e+00 : f32
    %344 = vector.broadcast %cst_128 : f32 to vector<1x32xf32>
    %345 = arith.addf %342, %344 : vector<1x32xf32>
    %346 = vector.broadcast %345 : vector<1x32xf32> to vector<8x32xf32>
    %347 = arith.mulf %346, %341 : vector<8x32xf32>
    %348 = vector.broadcast %343 : vector<1x32xf32> to vector<8x32xf32>
    %349 = arith.addf %347, %348 : vector<8x32xf32>
    %350 = arith.addf %303, %349 : vector<8x32xf32>
    %c0_129 = arith.constant 0 : index
    %c0_130 = arith.constant 0 : index
    %c0_131 = arith.constant 0 : index
    %351 = vector.load %arg22[%c0_129, %c0_130, %c0_131] : memref<1x8x32xf32, #tpu.memory_space<vmem>>, vector<1x8x32xf32>
    %352 = vector.shape_cast %351 : vector<1x8x32xf32> to vector<8x32xf32>
    %353 = vector.shape_cast %350 : vector<8x32xf32> to vector<1x8x32xf32>
    tpu.vector_store %arg22[%c0_129, %c0_130, %c0_131], %353 {strides = array<i32>} : memref<1x8x32xf32, #tpu.memory_space<vmem>>, vector<1x8x32xf32>,
    return
  }
  func.func @transform_0(%arg0: i32) -> (i32, i32, i32) {
    %c0_i32 = arith.constant 0 : i32
    %c0_i32_0 = arith.constant 0 : i32
    %c0_i32_1 = arith.constant 0 : i32
    return %arg0, %c0_i32, %c0_i32_0 : i32, i32, i32
  }
  func.func @transform_1(%arg0: i32) -> (i32, i32, i32) {
    %c0_i32 = arith.constant 0 : i32
    %c0_i32_0 = arith.constant 0 : i32
    %c0_i32_1 = arith.constant 0 : i32
    return %arg0, %c0_i32, %c0_i32_0 : i32, i32, i32
  }
  func.func @transform_2(%arg0: i32) -> (i32, i32, i32) {
    %c0_i32 = arith.constant 0 : i32
    %c0_i32_0 = arith.constant 0 : i32
    %c0_i32_1 = arith.constant 0 : i32
    return %arg0, %c0_i32, %c0_i32_0 : i32, i32, i32
  }
  func.func @transform_3(%arg0: i32) -> (i32, i32) {
    %c0_i32 = arith.constant 0 : i32
    %c0_i32_0 = arith.constant 0 : i32
    %c0_i32_1 = arith.constant 0 : i32
    return %c0_i32, %c0_i32_0 : i32, i32
  }
  func.func @transform_4(%arg0: i32) -> (i32, i32) {
    %c0_i32 = arith.constant 0 : i32
    %c0_i32_0 = arith.constant 0 : i32
    %c0_i32_1 = arith.constant 0 : i32
    return %c0_i32, %c0_i32_0 : i32, i32
  }
  func.func @transform_5(%arg0: i32) -> (i32, i32) {
    %c0_i32 = arith.constant 0 : i32
    %c0_i32_0 = arith.constant 0 : i32
    %c0_i32_1 = arith.constant 0 : i32
    return %c0_i32, %c0_i32_0 : i32, i32
  }
  func.func @transform_6(%arg0: i32) -> (i32, i32) {
    %c0_i32 = arith.constant 0 : i32
    %c0_i32_0 = arith.constant 0 : i32
    %c0_i32_1 = arith.constant 0 : i32
    return %c0_i32, %c0_i32_0 : i32, i32
  }
  func.func @transform_7(%arg0: i32) -> (i32, i32) {
    %c0_i32 = arith.constant 0 : i32
    %c0_i32_0 = arith.constant 0 : i32
    %c0_i32_1 = arith.constant 0 : i32
    return %c0_i32, %c0_i32_0 : i32, i32
  }
  func.func @transform_8(%arg0: i32) -> (i32, i32) {
    %c0_i32 = arith.constant 0 : i32
    %c0_i32_0 = arith.constant 0 : i32
    %c0_i32_1 = arith.constant 0 : i32
    return %c0_i32, %c0_i32_0 : i32, i32
  }
  func.func @transform_9(%arg0: i32) -> (i32, i32) {
    %c0_i32 = arith.constant 0 : i32
    %c0_i32_0 = arith.constant 0 : i32
    %c0_i32_1 = arith.constant 0 : i32
    return %c0_i32, %c0_i32_0 : i32, i32
  }
  func.func @transform_10(%arg0: i32) -> (i32, i32) {
    %c0_i32 = arith.constant 0 : i32
    %c0_i32_0 = arith.constant 0 : i32
    %c0_i32_1 = arith.constant 0 : i32
    return %c0_i32, %c0_i32_0 : i32, i32
  }
  func.func @transform_11(%arg0: i32) -> (i32, i32) {
    %c0_i32 = arith.constant 0 : i32
    %c0_i32_0 = arith.constant 0 : i32
    %c0_i32_1 = arith.constant 0 : i32
    return %c0_i32, %c0_i32_0 : i32, i32
  }
  func.func @transform_12(%arg0: i32) -> (i32, i32) {
    %c0_i32 = arith.constant 0 : i32
    %c0_i32_0 = arith.constant 0 : i32
    %c0_i32_1 = arith.constant 0 : i32
    return %c0_i32, %c0_i32_0 : i32, i32
  }
  func.func @transform_13(%arg0: i32) -> (i32, i32) {
    %c0_i32 = arith.constant 0 : i32
    %c0_i32_0 = arith.constant 0 : i32
    %c0_i32_1 = arith.constant 0 : i32
    return %c0_i32, %c0_i32_0 : i32, i32
  }
  func.func @transform_14(%arg0: i32) -> (i32, i32) {
    %c0_i32 = arith.constant 0 : i32
    %c0_i32_0 = arith.constant 0 : i32
    %c0_i32_1 = arith.constant 0 : i32
    return %c0_i32, %c0_i32_0 : i32, i32
  }
  func.func @transform_15(%arg0: i32) -> (i32, i32) {
    %c0_i32 = arith.constant 0 : i32
    %c0_i32_0 = arith.constant 0 : i32
    %c0_i32_1 = arith.constant 0 : i32
    return %c0_i32, %c0_i32_0 : i32, i32
  }
  func.func @transform_16(%arg0: i32) -> (i32, i32) {
    %c0_i32 = arith.constant 0 : i32
    %c0_i32_0 = arith.constant 0 : i32
    %c0_i32_1 = arith.constant 0 : i32
    return %c0_i32, %c0_i32_0 : i32, i32
  }
  func.func @transform_17(%arg0: i32) -> (i32, i32) {
    %c0_i32 = arith.constant 0 : i32
    %c0_i32_0 = arith.constant 0 : i32
    %c0_i32_1 = arith.constant 0 : i32
    return %c0_i32, %c0_i32_0 : i32, i32
  }
  func.func @transform_18(%arg0: i32) -> (i32, i32) {
    %c0_i32 = arith.constant 0 : i32
    %c0_i32_0 = arith.constant 0 : i32
    %c0_i32_1 = arith.constant 0 : i32
    return %c0_i32, %c0_i32_0 : i32, i32
  }
  func.func @transform_19(%arg0: i32) -> (i32, i32) {
    %c0_i32 = arith.constant 0 : i32
    %c0_i32_0 = arith.constant 0 : i32
    %c0_i32_1 = arith.constant 0 : i32
    return %c0_i32, %c0_i32_0 : i32, i32
  }
  func.func @transform_20(%arg0: i32) -> (i32, i32) {
    %c0_i32 = arith.constant 0 : i32
    %c0_i32_0 = arith.constant 0 : i32
    %c0_i32_1 = arith.constant 0 : i32
    return %c0_i32, %c0_i32_0 : i32, i32
  }
  func.func @transform_21(%arg0: i32) -> (i32, i32, i32) {
    %c0_i32 = arith.constant 0 : i32
    %c0_i32_0 = arith.constant 0 : i32
    %c0_i32_1 = arith.constant 0 : i32
    return %arg0, %c0_i32, %c0_i32_0 : i32, i32, i32
  }
}

</mosaic_0001>

<llo_original>
// kernel: tpu_custom_call.1
$region0: #{tpu_custom_call.1}
  #allocation0 [shape = 'u32[]', space=smem, size = 0x4, offset = 0x4, fixed_abs, tag = 'smem constant byte address 0x4 - core index']
  #allocation1 [shape = 'u32[72,128]{1,0:T(1,128)}', space=vmem, size = 0x9000, scoped, tag = 'internal scratch']
  %s0 = inlined_call_operand.vmem [shape: f32[2,1,32], index: 0, kind: input, shape index: {}]
  %s1 = inlined_call_operand.vmem [shape: f32[2,8,32], index: 1, kind: input, shape index: {}]
  %s2 = inlined_call_operand.hbm [shape: f32[2,8,32], index: 2, kind: input, shape index: {}]
  %s3 = inlined_call_operand.vmem [shape: bf16[32,192], index: 3, kind: input, shape index: {}]
  %s4 = inlined_call_operand.hbm [shape: f32[1,192], index: 4, kind: input, shape index: {}]
  %s5 = inlined_call_operand.hbm [shape: f32[3,32], index: 5, kind: input, shape index: {}]
  %s6 = inlined_call_operand.hbm [shape: f32[3,32], index: 6, kind: input, shape index: {}]
  %s7 = inlined_call_operand.hbm [shape: bf16[32,96], index: 7, kind: input, shape index: {}]
  %s8 = inlined_call_operand.hbm [shape: f32[1,96], index: 8, kind: input, shape index: {}]
  %s9 = inlined_call_operand.hbm [shape: bf16[32,32], index: 9, kind: input, shape index: {}]
  %s10 = inlined_call_operand.hbm [shape: f32[1,32], index: 10, kind: input, shape index: {}]
  %s11 = inlined_call_operand.hbm [shape: bf16[32,32], index: 11, kind: input, shape index: {}]
  %s12 = inlined_call_operand.hbm [shape: f32[1,32], index: 12, kind: input, shape index: {}]
  %s13 = inlined_call_operand.hbm [shape: bf16[32,64], index: 13, kind: input, shape index: {}]
  %s14 = inlined_call_operand.hbm [shape: f32[1,64], index: 14, kind: input, shape index: {}]
  %s15 = inlined_call_operand.hbm [shape: bf16[32,32], index: 15, kind: input, shape index: {}]
  %s16 = inlined_call_operand.hbm [shape: f32[1,32], index: 16, kind: input, shape index: {}]
  %s17 = inlined_call_operand.hbm [shape: bf16[32,64], index: 17, kind: input, shape index: {}]
  %s18 = inlined_call_operand.hbm [shape: f32[1,64], index: 18, kind: input, shape index: {}]
  %s19 = inlined_call_operand.vmem [shape: bf16[64,32], index: 19, kind: input, shape index: {}]
  %s20 = inlined_call_operand.vmem [shape: f32[1,32], index: 20, kind: input, shape index: {}]
  %s21 = inlined_call_operand.hbm [shape: f32[2,8,32], index: 21, kind: output, shape index: {}]
  %s22 = sld [smem:[#allocation0]]
  $region181: #{tpu_custom_call.1} parent=0
    _
  %s24 = ssub.s32 1, %s22
  %s25 = scalar_select 0, %s24, %s22
  $region1: #{tpu_custom_call.1} parent=0
    #allocation2 [shape = 'u8[8192]{0}', space=vmem, size = 0x2000, scoped, tag = 'input window, operand 2']
    #allocation3 [shape = 's32[2]{0}', space=sflag, size = 0x8, scoped, tag = 'scoped memory for tpu_custom_call.1']
    #allocation4 [shape = 's32[2]{0}', space=sflag, size = 0x8, scoped, tag = 'scoped memory for tpu_custom_call.1']
    #allocation5 [shape = 'u8[1024]{0}', space=vmem, size = 0x400, scoped, tag = 'input window, operand 4, single buffered']
    #allocation6 [shape = 's32[1]{0}', space=sflag, size = 0x4, scoped, tag = 'scoped memory for tpu_custom_call.1']
    #allocation7 [shape = 'u8[2048]{0}', space=vmem, size = 0x800, scoped, tag = 'input window, operand 5, single buffered']
    #allocation8 [shape = 'u8[2048]{0}', space=vmem, size = 0x800, scoped, tag = 'input window, operand 6, single buffered']
    #allocation9 [shape = 's32[1]{0}', space=sflag, size = 0x4, scoped, tag = 'scoped memory for tpu_custom_call.1']
    #allocation10 [shape = 'u8[8192]{0}', space=vmem, size = 0x2000, scoped, tag = 'input window, operand 7, single buffered']
    #allocation11 [shape = 'u8[512]{0}', space=vmem, size = 0x400, scoped, tag = 'input window, operand 8, single buffered']
    #allocation12 [shape = 's32[1]{0}', space=sflag, size = 0x4, scoped, tag = 'scoped memory for tpu_custom_call.1']
    #allocation13 [shape = 'u8[8192]{0}', space=vmem, size = 0x2000, scoped, tag = 'input window, operand 9, single buffered']
    #allocation14 [shape = 'u8[512]{0}', space=vmem, size = 0x400, scoped, tag = 'input window, operand 10, single buffered']
    #allocation15 [shape = 's32[1]{0}', space=sflag, size = 0x4, scoped, tag = 'scoped memory for tpu_custom_call.1']
    #allocation16 [shape = 'u8[8192]{0}', space=vmem, size = 0x2000, scoped, tag = 'input window, operand 11, single buffered']
    #allocation17 [shape = 'u8[512]{0}', space=vmem, size = 0x400, scoped, tag = 'input window, operand 12, single buffered']
    #allocation18 [shape = 's32[1]{0}', space=sflag, size = 0x4, scoped, tag = 'scoped memory for tpu_custom_call.1']
    #allocation19 [shape = 'u8[8192]{0}', space=vmem, size = 0x2000, scoped, tag = 'input window, operand 13, single buffered']
    #allocation20 [shape = 'u8[512]{0}', space=vmem, size = 0x400, scoped, tag = 'input window, operand 14, single buffered']
    #allocation21 [shape = 's32[1]{0}', space=sflag, size = 0x4, scoped, tag = 'scoped memory for tpu_custom_call.1']
    #allocation22 [shape = 'u8[8192]{0}', space=vmem, size = 0x2000, scoped, tag = 'input window, operand 15, single buffered']
    #allocation23 [shape = 'u8[512]{0}', space=vmem, size = 0x400, scoped, tag = 'input window, operand 16, single buffered']
    #allocation24 [shape = 's32[1]{0}', space=sflag, size = 0x4, scoped, tag = 'scoped memory for tpu_custom_call.1']
    #allocation25 [shape = 'u8[8192]{0}', space=vmem, size = 0x2000, scoped, tag = 'input window, operand 17, single buffered']
    #allocation26 [shape = 'u8[512]{0}', space=vmem, size = 0x400, scoped, tag = 'input window, operand 18, single buffered']
    #allocation27 [shape = 's32[1]{0}', space=sflag, size = 0x4, scoped, tag = 'scoped memory for tpu_custom_call.1']
    #allocation28 [shape = 'u8[8192]{0}', space=vmem, size = 0x2000, scoped, tag = 'output window, operand 0']
    %26 = vsyncpa [#allocation3], 0
    %s27 = scalar_lea.sflag [#allocation3], 1
    %28 = vsyncpa %s27, 0
    %29 = vsyncpa [#allocation6], 0
    %30 = vsyncpa [#allocation9], 0
    %31 = vsyncpa [#allocation12], 0
    %32 = vsyncpa [#allocation15], 0
    %33 = vsyncpa [#allocation18], 0
    %34 = vsyncpa [#allocation21], 0
    %35 = vsyncpa [#allocation24], 0
    %36 = vsyncpa [#allocation27], 0
    %37 = vsyncpa [#allocation4], 0
    %s38 = scalar_lea.sflag [#allocation4], 1
    %39 = vsyncpa %s38, 0
    loop: start=0, step=1, limit=4
    $region2: #{tpu_custom_call.1} parent=1 // loop_pre_header
      _
    $region3: #{tpu_custom_call.1} parent=1 // loop_header
      %s41 = sphi 0, %s45
      %p42 = scmp.ge.s32.totalorder %s41, 4
      %s51 = sphi 0, %s53
      %s54 = sphi 0, %s51
      %s55 = sphi 0, %s54
      %s71 = sphi 0, %s55
      %s77 = sphi 0, %s79
      %s80 = sphi 0, %s77
      %s81 = sphi 0, %s80
      %s97 = sphi 0, %s81
      %s103 = sphi 0, %s105
      %s106 = sphi 0, %s103
      %s107 = sphi 0, %s106
      %s123 = sphi 0, %s107
      %s127 = sphi 0, %s127
      %s129 = sphi 0, %s127
      %s130 = sphi 0, %s129
      %s144 = sphi 0, %s130
      %s148 = sphi 0, %s148
      %s150 = sphi 0, %s148
      %s151 = sphi 0, %s150
      %s165 = sphi 0, %s151
      %s169 = sphi 0, %s169
      %s171 = sphi 0, %s169
      %s172 = sphi 0, %s171
      %s186 = sphi 0, %s172
      %s190 = sphi 0, %s190
      %s192 = sphi 0, %s190
      %s193 = sphi 0, %s192
      %s207 = sphi 0, %s193
      %s211 = sphi 0, %s211
      %s213 = sphi 0, %s211
      %s214 = sphi 0, %s213
      %s228 = sphi 0, %s214
      %s232 = sphi 0, %s232
      %s234 = sphi 0, %s232
      %s235 = sphi 0, %s234
      %s249 = sphi 0, %s235
      %s253 = sphi 0, %s253
      %s255 = sphi 0, %s253
      %s256 = sphi 0, %s255
      %s270 = sphi 0, %s256
      %s274 = sphi 0, %s274
      %s276 = sphi 0, %s274
      %s277 = sphi 0, %s276
      %s291 = sphi 0, %s277
      %s295 = sphi 0, %s295
      %s297 = sphi 0, %s295
      %s298 = sphi 0, %s297
      %s312 = sphi 0, %s298
      %s316 = sphi 0, %s316
      %s318 = sphi 0, %s316
      %s319 = sphi 0, %s318
      %s333 = sphi 0, %s319
      %s337 = sphi 0, %s337
      %s339 = sphi 0, %s337
      %s340 = sphi 0, %s339
      %s354 = sphi 0, %s340
      %s358 = sphi 0, %s358
      %s360 = sphi 0, %s358
      %s361 = sphi 0, %s360
      %s375 = sphi 0, %s361
      %s379 = sphi 0, %s379
      %s381 = sphi 0, %s379
      %s382 = sphi 0, %s381
      %s396 = sphi 0, %s382
      %s400 = sphi 0, %s400
      %s402 = sphi 0, %s400
      %s403 = sphi 0, %s402
      %s417 = sphi 0, %s403
      %s421 = sphi 0, %s421
      %s423 = sphi 0, %s421
      %s424 = sphi 0, %s423
      %s438 = sphi 0, %s424
      %s442 = sphi 0, %s442
      %s444 = sphi 0, %s442
      %s445 = sphi 0, %s444
      %s459 = sphi 0, %s445
      %s463 = sphi 0, %s463
      %s465 = sphi 0, %s463
      %s466 = sphi 0, %s465
      %s480 = sphi 0, %s466
      %s484 = sphi 0, %s484
      %s486 = sphi 0, %s484
      %s487 = sphi 0, %s486
      %s501 = sphi 0, %s487
      %s507 = sphi 0, %s509
      %s510 = sphi 0, %s507
      %s511 = sphi 0, %s510
      %s527 = sphi 0, %s511
    $region4: #{tpu_custom_call.1} parent=1 // loop_header_branch
      %44 = sbr.rel (%p42) target = $region8
    $region5: #{tpu_custom_call.1} parent=1 // loop_body
      %s46 = ssub.s32 %s41, 1
      %s47 = ssub.s32 %s41, 2
      %s48 = sadd.s32 %s41, 1
      %s49 = ssub.s32 %s41, %s48
      %p50 = scmp.eq.s32.totalorder %s49, 0
      %s52 = sadd.s32 %s51, 1
      %s53 = scalar_select %p50, %s51, %s52
      %p56 = pneg %p50
      %p57 = scmp.eq.s32.totalorder %s41, 1
      %p58 = por %p56, %p57
      %p59 = scmp.ne.s32.totalorder %s51, %s54
      %p60 = scmp.eq.s32.totalorder %s41, 0
      %p61 = por %p59, %p60
      %p62 = scmp.ne.s32.totalorder %s51, %s54
      %p63 = scmp.eq.s32.totalorder %s46, 1
      %p64 = por %p62, %p63
      %p65 = scmp.ne.s32.totalorder %s54, %s55
      %p66 = scmp.eq.s32.totalorder %s46, 0
      %p67 = por %p65, %p66
      %p68 = scmp.ne.s32.totalorder %s54, %s55
      %p69 = scmp.eq.s32.totalorder %s47, 1
      %p70 = por %p68, %p69
      %p72 = scmp.ne.s32.totalorder %s55, %s71
      %p73 = scmp.eq.s32.totalorder %s47, 0
      %p74 = por %p72, %p73
      %s75 = ssub.s32 %s41, %s48
      %p76 = scmp.eq.s32.totalorder %s75, 0
      %s78 = sadd.s32 %s77, 1
      %s79 = scalar_select %p76, %s77, %s78
      %p82 = pneg %p76
      %p83 = scmp.eq.s32.totalorder %s41, 1
      %p84 = por %p82, %p83
      %p85 = scmp.ne.s32.totalorder %s77, %s80
      %p86 = scmp.eq.s32.totalorder %s41, 0
      %p87 = por %p85, %p86
      %p88 = scmp.ne.s32.totalorder %s77, %s80
      %p89 = scmp.eq.s32.totalorder %s46, 1
      %p90 = por %p88, %p89
      %p91 = scmp.ne.s32.totalorder %s80, %s81
      %p92 = scmp.eq.s32.totalorder %s46, 0
      %p93 = por %p91, %p92
      %p94 = scmp.ne.s32.totalorder %s80, %s81
      %p95 = scmp.eq.s32.totalorder %s47, 1
      %p96 = por %p94, %p95
      %p98 = scmp.ne.s32.totalorder %s81, %s97
      %p99 = scmp.eq.s32.totalorder %s47, 0
      %p100 = por %p98, %p99
      %s101 = ssub.s32 %s41, %s48
      %p102 = scmp.eq.s32.totalorder %s101, 0
      %s104 = sadd.s32 %s103, 1
      %s105 = scalar_select %p102, %s103, %s104
      %p108 = pneg %p102
      %p109 = scmp.eq.s32.totalorder %s41, 1
      %p110 = por %p108, %p109
      %p111 = scmp.ne.s32.totalorder %s103, %s106
      %p112 = scmp.eq.s32.totalorder %s41, 0
      %p113 = por %p111, %p112
      %p114 = scmp.ne.s32.totalorder %s103, %s106
      %p115 = scmp.eq.s32.totalorder %s46, 1
      %p116 = por %p114, %p115
      %p117 = scmp.ne.s32.totalorder %s106, %s107
      %p118 = scmp.eq.s32.totalorder %s46, 0
      %p119 = por %p117, %p118
      %p120 = scmp.ne.s32.totalorder %s106, %s107
      %p121 = scmp.eq.s32.totalorder %s47, 1
      %p122 = por %p120, %p121
      %p124 = scmp.ne.s32.totalorder %s107, %s123
      %p125 = scmp.eq.s32.totalorder %s47, 0
      %p126 = por %p124, %p125
      %s128 = sadd.s32 %s127, 1
      %p131 = scmp.eq.s32.totalorder %s41, 1
      %p132 = scmp.ne.s32.totalorder %s127, %s129
      %p133 = scmp.eq.s32.totalorder %s41, 0
      %p134 = por %p132, %p133
      %p135 = scmp.ne.s32.totalorder %s127, %s129
      %p136 = scmp.eq.s32.totalorder %s46, 1
      %p137 = por %p135, %p136
      %p138 = scmp.ne.s32.totalorder %s129, %s130
      %p139 = scmp.eq.s32.totalorder %s46, 0
      %p140 = por %p138, %p139
      %p141 = scmp.ne.s32.totalorder %s129, %s130
      %p142 = scmp.eq.s32.totalorder %s47, 1
      %p143 = por %p141, %p142
      %p145 = scmp.ne.s32.totalorder %s130, %s144
      %p146 = scmp.eq.s32.totalorder %s47, 0
      %p147 = por %p145, %p146
      %s149 = sadd.s32 %s148, 1
      %p152 = scmp.eq.s32.totalorder %s41, 1
      %p153 = scmp.ne.s32.totalorder %s148, %s150
      %p154 = scmp.eq.s32.totalorder %s41, 0
      %p155 = por %p153, %p154
      %p156 = scmp.ne.s32.totalorder %s148, %s150
      %p157 = scmp.eq.s32.totalorder %s46, 1
      %p158 = por %p156, %p157
      %p159 = scmp.ne.s32.totalorder %s150, %s151
      %p160 = scmp.eq.s32.totalorder %s46, 0
      %p161 = por %p159, %p160
      %p162 = scmp.ne.s32.totalorder %s150, %s151
      %p163 = scmp.eq.s32.totalorder %s47, 1
      %p164 = por %p162, %p163
      %p166 = scmp.ne.s32.totalorder %s151, %s165
      %p167 = scmp.eq.s32.totalorder %s47, 0
      %p168 = por %p166, %p167
      %s170 = sadd.s32 %s169, 1
      %p173 = scmp.eq.s32.totalorder %s41, 1
      %p174 = scmp.ne.s32.totalorder %s169, %s171
      %p175 = scmp.eq.s32.totalorder %s41, 0
      %p176 = por %p174, %p175
      %p177 = scmp.ne.s32.totalorder %s169, %s171
      %p178 = scmp.eq.s32.totalorder %s46, 1
      %p179 = por %p177, %p178
      %p180 = scmp.ne.s32.totalorder %s171, %s172
      %p181 = scmp.eq.s32.totalorder %s46, 0
      %p182 = por %p180, %p181
      %p183 = scmp.ne.s32.totalorder %s171, %s172
      %p184 = scmp.eq.s32.totalorder %s47, 1
      %p185 = por %p183, %p184
      %p187 = scmp.ne.s32.totalorder %s172, %s186
      %p188 = scmp.eq.s32.totalorder %s47, 0
      %p189 = por %p187, %p188
      %s191 = sadd.s32 %s190, 1
      %p194 = scmp.eq.s32.totalorder %s41, 1
      %p195 = scmp.ne.s32.totalorder %s190, %s192
      %p196 = scmp.eq.s32.totalorder %s41, 0
      %p197 = por %p195, %p196
      %p198 = scmp.ne.s32.totalorder %s190, %s192
      %p199 = scmp.eq.s32.totalorder %s46, 1
      %p200 = por %p198, %p199
      %p201 = scmp.ne.s32.totalorder %s192, %s193
      %p202 = scmp.eq.s32.totalorder %s46, 0
      %p203 = por %p201, %p202
      %p204 = scmp.ne.s32.totalorder %s192, %s193
      %p205 = scmp.eq.s32.totalorder %s47, 1
      %p206 = por %p204, %p205
      %p208 = scmp.ne.s32.totalorder %s193, %s207
      %p209 = scmp.eq.s32.totalorder %s47, 0
      %p210 = por %p208, %p209
      %s212 = sadd.s32 %s211, 1
      %p215 = scmp.eq.s32.totalorder %s41, 1
      %p216 = scmp.ne.s32.totalorder %s211, %s213
      %p217 = scmp.eq.s32.totalorder %s41, 0
      %p218 = por %p216, %p217
      %p219 = scmp.ne.s32.totalorder %s211, %s213
      %p220 = scmp.eq.s32.totalorder %s46, 1
      %p221 = por %p219, %p220
      %p222 = scmp.ne.s32.totalorder %s213, %s214
      %p223 = scmp.eq.s32.totalorder %s46, 0
      %p224 = por %p222, %p223
      %p225 = scmp.ne.s32.totalorder %s213, %s214
      %p226 = scmp.eq.s32.totalorder %s47, 1
      %p227 = por %p225, %p226
      %p229 = scmp.ne.s32.totalorder %s214, %s228
      %p230 = scmp.eq.s32.totalorder %s47, 0
      %p231 = por %p229, %p230
      %s233 = sadd.s32 %s232, 1
      %p236 = scmp.eq.s32.totalorder %s41, 1
      %p237 = scmp.ne.s32.totalorder %s232, %s234
      %p238 = scmp.eq.s32.totalorder %s41, 0
      %p239 = por %p237, %p238
      %p240 = scmp.ne.s32.totalorder %s232, %s234
      %p241 = scmp.eq.s32.totalorder %s46, 1
      %p242 = por %p240, %p241
      %p243 = scmp.ne.s32.totalorder %s234, %s235
      %p244 = scmp.eq.s32.totalorder %s46, 0
      %p245 = por %p243, %p244
      %p246 = scmp.ne.s32.totalorder %s234, %s235
      %p247 = scmp.eq.s32.totalorder %s47, 1
      %p248 = por %p246, %p247
      %p250 = scmp.ne.s32.totalorder %s235, %s249
      %p251 = scmp.eq.s32.totalorder %s47, 0
      %p252 = por %p250, %p251
      %s254 = sadd.s32 %s253, 1
      %p257 = scmp.eq.s32.totalorder %s41, 1
      %p258 = scmp.ne.s32.totalorder %s253, %s255
      %p259 = scmp.eq.s32.totalorder %s41, 0
      %p260 = por %p258, %p259
      %p261 = scmp.ne.s32.totalorder %s253, %s255
      %p262 = scmp.eq.s32.totalorder %s46, 1
      %p263 = por %p261, %p262
      %p264 = scmp.ne.s32.totalorder %s255, %s256
      %p265 = scmp.eq.s32.totalorder %s46, 0
      %p266 = por %p264, %p265
      %p267 = scmp.ne.s32.totalorder %s255, %s256
      %p268 = scmp.eq.s32.totalorder %s47, 1
      %p269 = por %p267, %p268
      %p271 = scmp.ne.s32.totalorder %s256, %s270
      %p272 = scmp.eq.s32.totalorder %s47, 0
      %p273 = por %p271, %p272
      %s275 = sadd.s32 %s274, 1
      %p278 = scmp.eq.s32.totalorder %s41, 1
      %p279 = scmp.ne.s32.totalorder %s274, %s276
      %p280 = scmp.eq.s32.totalorder %s41, 0
      %p281 = por %p279, %p280
      %p282 = scmp.ne.s32.totalorder %s274, %s276
      %p283 = scmp.eq.s32.totalorder %s46, 1
      %p284 = por %p282, %p283
      %p285 = scmp.ne.s32.totalorder %s276, %s277
      %p286 = scmp.eq.s32.totalorder %s46, 0
      %p287 = por %p285, %p286
      %p288 = scmp.ne.s32.totalorder %s276, %s277
      %p289 = scmp.eq.s32.totalorder %s47, 1
      %p290 = por %p288, %p289
      %p292 = scmp.ne.s32.totalorder %s277, %s291
      %p293 = scmp.eq.s32.totalorder %s47, 0
      %p294 = por %p292, %p293
      %s296 = sadd.s32 %s295, 1
      %p299 = scmp.eq.s32.totalorder %s41, 1
      %p300 = scmp.ne.s32.totalorder %s295, %s297
      %p301 = scmp.eq.s32.totalorder %s41, 0
      %p302 = por %p300, %p301
      %p303 = scmp.ne.s32.totalorder %s295, %s297
      %p304 = scmp.eq.s32.totalorder %s46, 1
      %p305 = por %p303, %p304
      %p306 = scmp.ne.s32.totalorder %s297, %s298
      %p307 = scmp.eq.s32.totalorder %s46, 0
      %p308 = por %p306, %p307
      %p309 = scmp.ne.s32.totalorder %s297, %s298
      %p310 = scmp.eq.s32.totalorder %s47, 1
      %p311 = por %p309, %p310
      %p313 = scmp.ne.s32.totalorder %s298, %s312
      %p314 = scmp.eq.s32.totalorder %s47, 0
      %p315 = por %p313, %p314
      %s317 = sadd.s32 %s316, 1
      %p320 = scmp.eq.s32.totalorder %s41, 1
      %p321 = scmp.ne.s32.totalorder %s316, %s318
      %p322 = scmp.eq.s32.totalorder %s41, 0
      %p323 = por %p321, %p322
      %p324 = scmp.ne.s32.totalorder %s316, %s318
      %p325 = scmp.eq.s32.totalorder %s46, 1
      %p326 = por %p324, %p325
      %p327 = scmp.ne.s32.totalorder %s318, %s319
      %p328 = scmp.eq.s32.totalorder %s46, 0
      %p329 = por %p327, %p328
      %p330 = scmp.ne.s32.totalorder %s318, %s319
      %p331 = scmp.eq.s32.totalorder %s47, 1
      %p332 = por %p330, %p331
      %p334 = scmp.ne.s32.totalorder %s319, %s333
      %p335 = scmp.eq.s32.totalorder %s47, 0
      %p336 = por %p334, %p335
      %s338 = sadd.s32 %s337, 1
      %p341 = scmp.eq.s32.totalorder %s41, 1
      %p342 = scmp.ne.s32.totalorder %s337, %s339
      %p343 = scmp.eq.s32.totalorder %s41, 0
      %p344 = por %p342, %p343
      %p345 = scmp.ne.s32.totalorder %s337, %s339
      %p346 = scmp.eq.s32.totalorder %s46, 1
      %p347 = por %p345, %p346
      %p348 = scmp.ne.s32.totalorder %s339, %s340
      %p349 = scmp.eq.s32.totalorder %s46, 0
      %p350 = por %p348, %p349
      %p351 = scmp.ne.s32.totalorder %s339, %s340
      %p352 = scmp.eq.s32.totalorder %s47, 1
      %p353 = por %p351, %p352
      %p355 = scmp.ne.s32.totalorder %s340, %s354
      %p356 = scmp.eq.s32.totalorder %s47, 0
      %p357 = por %p355, %p356
      %s359 = sadd.s32 %s358, 1
      %p362 = scmp.eq.s32.totalorder %s41, 1
      %p363 = scmp.ne.s32.totalorder %s358, %s360
      %p364 = scmp.eq.s32.totalorder %s41, 0
      %p365 = por %p363, %p364
      %p366 = scmp.ne.s32.totalorder %s358, %s360
      %p367 = scmp.eq.s32.totalorder %s46, 1
      %p368 = por %p366, %p367
      %p369 = scmp.ne.s32.totalorder %s360, %s361
      %p370 = scmp.eq.s32.totalorder %s46, 0
      %p371 = por %p369, %p370
      %p372 = scmp.ne.s32.totalorder %s360, %s361
      %p373 = scmp.eq.s32.totalorder %s47, 1
      %p374 = por %p372, %p373
      %p376 = scmp.ne.s32.totalorder %s361, %s375
      %p377 = scmp.eq.s32.totalorder %s47, 0
      %p378 = por %p376, %p377
      %s380 = sadd.s32 %s379, 1
      %p383 = scmp.eq.s32.totalorder %s41, 1
      %p384 = scmp.ne.s32.totalorder %s379, %s381
      %p385 = scmp.eq.s32.totalorder %s41, 0
      %p386 = por %p384, %p385
      %p387 = scmp.ne.s32.totalorder %s379, %s381
      %p388 = scmp.eq.s32.totalorder %s46, 1
      %p389 = por %p387, %p388
      %p390 = scmp.ne.s32.totalorder %s381, %s382
      %p391 = scmp.eq.s32.totalorder %s46, 0
      %p392 = por %p390, %p391
      %p393 = scmp.ne.s32.totalorder %s381, %s382
      %p394 = scmp.eq.s32.totalorder %s47, 1
      %p395 = por %p393, %p394
      %p397 = scmp.ne.s32.totalorder %s382, %s396
      %p398 = scmp.eq.s32.totalorder %s47, 0
      %p399 = por %p397, %p398
      %s401 = sadd.s32 %s400, 1
      %p404 = scmp.eq.s32.totalorder %s41, 1
      %p405 = scmp.ne.s32.totalorder %s400, %s402
      %p406 = scmp.eq.s32.totalorder %s41, 0
      %p407 = por %p405, %p406
      %p408 = scmp.ne.s32.totalorder %s400, %s402
      %p409 = scmp.eq.s32.totalorder %s46, 1
      %p410 = por %p408, %p409
      %p411 = scmp.ne.s32.totalorder %s402, %s403
      %p412 = scmp.eq.s32.totalorder %s46, 0
      %p413 = por %p411, %p412
      %p414 = scmp.ne.s32.totalorder %s402, %s403
      %p415 = scmp.eq.s32.totalorder %s47, 1
      %p416 = por %p414, %p415
      %p418 = scmp.ne.s32.totalorder %s403, %s417
      %p419 = scmp.eq.s32.totalorder %s47, 0
      %p420 = por %p418, %p419
      %s422 = sadd.s32 %s421, 1
      %p425 = scmp.eq.s32.totalorder %s41, 1
      %p426 = scmp.ne.s32.totalorder %s421, %s423
      %p427 = scmp.eq.s32.totalorder %s41, 0
      %p428 = por %p426, %p427
      %p429 = scmp.ne.s32.totalorder %s421, %s423
      %p430 = scmp.eq.s32.totalorder %s46, 1
      %p431 = por %p429, %p430
      %p432 = scmp.ne.s32.totalorder %s423, %s424
      %p433 = scmp.eq.s32.totalorder %s46, 0
      %p434 = por %p432, %p433
      %p435 = scmp.ne.s32.totalorder %s423, %s424
      %p436 = scmp.eq.s32.totalorder %s47, 1
      %p437 = por %p435, %p436
      %p439 = scmp.ne.s32.totalorder %s424, %s438
      %p440 = scmp.eq.s32.totalorder %s47, 0
      %p441 = por %p439, %p440
      %s443 = sadd.s32 %s442, 1
      %p446 = scmp.eq.s32.totalorder %s41, 1
      %p447 = scmp.ne.s32.totalorder %s442, %s444
      %p448 = scmp.eq.s32.totalorder %s41, 0
      %p449 = por %p447, %p448
      %p450 = scmp.ne.s32.totalorder %s442, %s444
      %p451 = scmp.eq.s32.totalorder %s46, 1
      %p452 = por %p450, %p451
      %p453 = scmp.ne.s32.totalorder %s444, %s445
      %p454 = scmp.eq.s32.totalorder %s46, 0
      %p455 = por %p453, %p454
      %p456 = scmp.ne.s32.totalorder %s444, %s445
      %p457 = scmp.eq.s32.totalorder %s47, 1
      %p458 = por %p456, %p457
      %p460 = scmp.ne.s32.totalorder %s445, %s459
      %p461 = scmp.eq.s32.totalorder %s47, 0
      %p462 = por %p460, %p461
      %s464 = sadd.s32 %s463, 1
      %p467 = scmp.eq.s32.totalorder %s41, 1
      %p468 = scmp.ne.s32.totalorder %s463, %s465
      %p469 = scmp.eq.s32.totalorder %s41, 0
      %p470 = por %p468, %p469
      %p471 = scmp.ne.s32.totalorder %s463, %s465
      %p472 = scmp.eq.s32.totalorder %s46, 1
      %p473 = por %p471, %p472
      %p474 = scmp.ne.s32.totalorder %s465, %s466
      %p475 = scmp.eq.s32.totalorder %s46, 0
      %p476 = por %p474, %p475
      %p477 = scmp.ne.s32.totalorder %s465, %s466
      %p478 = scmp.eq.s32.totalorder %s47, 1
      %p479 = por %p477, %p478
      %p481 = scmp.ne.s32.totalorder %s466, %s480
      %p482 = scmp.eq.s32.totalorder %s47, 0
      %p483 = por %p481, %p482
      %s485 = sadd.s32 %s484, 1
      %p488 = scmp.eq.s32.totalorder %s41, 1
      %p489 = scmp.ne.s32.totalorder %s484, %s486
      %p490 = scmp.eq.s32.totalorder %s41, 0
      %p491 = por %p489, %p490
      %p492 = scmp.ne.s32.totalorder %s484, %s486
      %p493 = scmp.eq.s32.totalorder %s46, 1
      %p494 = por %p492, %p493
      %p495 = scmp.ne.s32.totalorder %s486, %s487
      %p496 = scmp.eq.s32.totalorder %s46, 0
      %p497 = por %p495, %p496
      %p498 = scmp.ne.s32.totalorder %s486, %s487
      %p499 = scmp.eq.s32.totalorder %s47, 1
      %p500 = por %p498, %p499
      %p502 = scmp.ne.s32.totalorder %s487, %s501
      %p503 = scmp.eq.s32.totalorder %s47, 0
      %p504 = por %p502, %p503
      %s505 = ssub.s32 %s41, %s48
      %p506 = scmp.eq.s32.totalorder %s505, 0
      %s508 = sadd.s32 %s507, 1
      %s509 = scalar_select %p506, %s507, %s508
      %p512 = pneg %p506
      %p513 = scmp.eq.s32.totalorder %s41, 1
      %p514 = por %p512, %p513
      %p515 = scmp.ne.s32.totalorder %s507, %s510
      %p516 = scmp.eq.s32.totalorder %s41, 0
      %p517 = por %p515, %p516
      %p518 = scmp.ne.s32.totalorder %s507, %s510
      %p519 = scmp.eq.s32.totalorder %s46, 1
      %p520 = por %p518, %p519
      %p521 = scmp.ne.s32.totalorder %s510, %s511
      %p522 = scmp.eq.s32.totalorder %s46, 0
      %p523 = por %p521, %p522
      %p524 = scmp.ne.s32.totalorder %s510, %s511
      %p525 = scmp.eq.s32.totalorder %s47, 1
      %p526 = por %p524, %p525
      %p528 = scmp.ne.s32.totalorder %s511, %s527
      %p529 = scmp.eq.s32.totalorder %s47, 0
      %p530 = por %p528, %p529
      %p531 = scmp.le.s32.totalorder 1, %s41
      %p532 = scmp.lt.s32.totalorder %s41, 3
      %p533 = pnand %p531, %p532
      %p534 = pneg %p533
      // Predicated region
      $region9: #{tpu_custom_call.1} parent=5 // pred_check
        _
      $region10: #{tpu_custom_call.1} parent=5 // pred_check_branch
        %536 = sbr.rel (%p533) target = $region12
      $region11: #{tpu_custom_call.1} parent=5 // pred_region
        %s537 = ssub.s32 %s41, 1
        // Predicated region
        $region13: #{tpu_custom_call.1} parent=11 // pred_check
          %p538 = pneg %p140
        $region14: #{tpu_custom_call.1} parent=11 // pred_check_branch
          %540 = sbr.rel (%p538) target = $region16
        $region15: #{tpu_custom_call.1} parent=11 // pred_region
          _
        $region16: #{tpu_custom_call.1} parent=11 // pred_fallthru
          _
        // Predicated region
        $region17: #{tpu_custom_call.1} parent=11 // pred_check
          %p541 = pneg %p161
        $region18: #{tpu_custom_call.1} parent=11 // pred_check_branch
          %543 = sbr.rel (%p541) target = $region20
        $region19: #{tpu_custom_call.1} parent=11 // pred_region
          %545 = vsyncadd [#allocation6], 0
          %s547 = sshll.u32 %s4, 4
          %s548 = int_to_ptr.hbm [resolvable:$true] %s547
          %s549 = sshll.u32 [#allocation5], 4
          %s550 = int_to_ptr.vmem [resolvable:$true] %s549
          %552 = dma.hbm_to_vmem [thread:$0]  %s548, 32, %s550, [#allocation6]
        $region20: #{tpu_custom_call.1} parent=11 // pred_fallthru
          _
        // Predicated region
        $region21: #{tpu_custom_call.1} parent=11 // pred_check
          %p553 = pneg %p182
        $region22: #{tpu_custom_call.1} parent=11 // pred_check_branch
          %555 = sbr.rel (%p553) target = $region24
        $region23: #{tpu_custom_call.1} parent=11 // pred_region
          %557 = vsyncadd [#allocation6], 0
          %s559 = sshll.u32 %s5, 4
          %s560 = int_to_ptr.hbm [resolvable:$true] %s559
          %s561 = sshll.u32 [#allocation7], 4
          %s562 = int_to_ptr.vmem [resolvable:$true] %s561
          %564 = dma.hbm_to_vmem [thread:$0]  %s560, 64, %s562, [#allocation6]
        $region24: #{tpu_custom_call.1} parent=11 // pred_fallthru
          _
        // Predicated region
        $region25: #{tpu_custom_call.1} parent=11 // pred_check
          %p565 = pneg %p203
        $region26: #{tpu_custom_call.1} parent=11 // pred_check_branch
          %567 = sbr.rel (%p565) target = $region28
        $region27: #{tpu_custom_call.1} parent=11 // pred_region
          %569 = vsyncadd [#allocation9], 0
          %s571 = sshll.u32 %s6, 4
          %s572 = int_to_ptr.hbm [resolvable:$true] %s571
          %s573 = sshll.u32 [#allocation8], 4
          %s574 = int_to_ptr.vmem [resolvable:$true] %s573
          %576 = dma.hbm_to_vmem [thread:$0]  %s572, 64, %s574, [#allocation9]
        $region28: #{tpu_custom_call.1} parent=11 // pred_fallthru
          _
        // Predicated region
        $region29: #{tpu_custom_call.1} parent=11 // pred_check
          %p577 = pneg %p224
        $region30: #{tpu_custom_call.1} parent=11 // pred_check_branch
          %579 = sbr.rel (%p577) target = $region32
        $region31: #{tpu_custom_call.1} parent=11 // pred_region
          %581 = vsyncadd [#allocation9], 0
          %s582 = sshll.u32 %s7, 4
          %s583 = int_to_ptr.hbm [resolvable:$true] %s582
          %s584 = sshll.u32 [#allocation10], 4
          %s585 = int_to_ptr.vmem [resolvable:$true] %s584
          %590 = dma.hbm_to_vmem [thread:$0]  %s583, 256, %s585, [#allocation9], 64, 64, 4
        $region32: #{tpu_custom_call.1} parent=11 // pred_fallthru
          _
        // Predicated region
        $region33: #{tpu_custom_call.1} parent=11 // pred_check
          %p591 = pneg %p245
        $region34: #{tpu_custom_call.1} parent=11 // pred_check_branch
          %593 = sbr.rel (%p591) target = $region36
        $region35: #{tpu_custom_call.1} parent=11 // pred_region
          %595 = vsyncadd [#allocation12], 0
          %s597 = sshll.u32 %s8, 4
          %s598 = int_to_ptr.hbm [resolvable:$true] %s597
          %s599 = sshll.u32 [#allocation11], 4
          %s600 = int_to_ptr.vmem [resolvable:$true] %s599
          %602 = dma.hbm_to_vmem [thread:$0]  %s598, 16, %s600, [#allocation12]
        $region36: #{tpu_custom_call.1} parent=11 // pred_fallthru
          _
        // Predicated region
        $region37: #{tpu_custom_call.1} parent=11 // pred_check
          %p603 = pneg %p266
        $region38: #{tpu_custom_call.1} parent=11 // pred_check_branch
          %605 = sbr.rel (%p603) target = $region40
        $region39: #{tpu_custom_call.1} parent=11 // pred_region
          %607 = vsyncadd [#allocation12], 0
          %s608 = sshll.u32 %s9, 4
          %s609 = int_to_ptr.hbm [resolvable:$true] %s608
          %s610 = sshll.u32 [#allocation13], 4
          %s611 = int_to_ptr.vmem [resolvable:$true] %s610
          %616 = dma.hbm_to_vmem [thread:$0]  %s609, 256, %s611, [#allocation12], 64, 64, 4
        $region40: #{tpu_custom_call.1} parent=11 // pred_fallthru
          _
        // Predicated region
        $region41: #{tpu_custom_call.1} parent=11 // pred_check
          %p617 = pneg %p287
        $region42: #{tpu_custom_call.1} parent=11 // pred_check_branch
          %619 = sbr.rel (%p617) target = $region44
        $region43: #{tpu_custom_call.1} parent=11 // pred_region
          %621 = vsyncadd [#allocation15], 0
          %s623 = sshll.u32 %s10, 4
          %s624 = int_to_ptr.hbm [resolvable:$true] %s623
          %s625 = sshll.u32 [#allocation14], 4
          %s626 = int_to_ptr.vmem [resolvable:$true] %s625
          %628 = dma.hbm_to_vmem [thread:$0]  %s624, 16, %s626, [#allocation15]
        $region44: #{tpu_custom_call.1} parent=11 // pred_fallthru
          _
        // Predicated region
        $region45: #{tpu_custom_call.1} parent=11 // pred_check
          %p629 = pneg %p308
        $region46: #{tpu_custom_call.1} parent=11 // pred_check_branch
          %631 = sbr.rel (%p629) target = $region48
        $region47: #{tpu_custom_call.1} parent=11 // pred_region
          %633 = vsyncadd [#allocation15], 0
          %s634 = sshll.u32 %s11, 4
          %s635 = int_to_ptr.hbm [resolvable:$true] %s634
          %s636 = sshll.u32 [#allocation16], 4
          %s637 = int_to_ptr.vmem [resolvable:$true] %s636
          %642 = dma.hbm_to_vmem [thread:$0]  %s635, 256, %s637, [#allocation15], 64, 64, 4
        $region48: #{tpu_custom_call.1} parent=11 // pred_fallthru
          _
        // Predicated region
        $region49: #{tpu_custom_call.1} parent=11 // pred_check
          %p643 = pneg %p329
        $region50: #{tpu_custom_call.1} parent=11 // pred_check_branch
          %645 = sbr.rel (%p643) target = $region52
        $region51: #{tpu_custom_call.1} parent=11 // pred_region
          %647 = vsyncadd [#allocation18], 0
          %s649 = sshll.u32 %s12, 4
          %s650 = int_to_ptr.hbm [resolvable:$true] %s649
          %s651 = sshll.u32 [#allocation17], 4
          %s652 = int_to_ptr.vmem [resolvable:$true] %s651
          %654 = dma.hbm_to_vmem [thread:$0]  %s650, 16, %s652, [#allocation18]
        $region52: #{tpu_custom_call.1} parent=11 // pred_fallthru
          _
        // Predicated region
        $region53: #{tpu_custom_call.1} parent=11 // pred_check
          %p655 = pneg %p350
        $region54: #{tpu_custom_call.1} parent=11 // pred_check_branch
          %657 = sbr.rel (%p655) target = $region56
        $region55: #{tpu_custom_call.1} parent=11 // pred_region
          %659 = vsyncadd [#allocation18], 0
          %s660 = sshll.u32 %s13, 4
          %s661 = int_to_ptr.hbm [resolvable:$true] %s660
          %s662 = sshll.u32 [#allocation19], 4
          %s663 = int_to_ptr.vmem [resolvable:$true] %s662
          %668 = dma.hbm_to_vmem [thread:$0]  %s661, 256, %s663, [#allocation18], 64, 64, 4
        $region56: #{tpu_custom_call.1} parent=11 // pred_fallthru
          _
        // Predicated region
        $region57: #{tpu_custom_call.1} parent=11 // pred_check
          %p669 = pneg %p371
        $region58: #{tpu_custom_call.1} parent=11 // pred_check_branch
          %671 = sbr.rel (%p669) target = $region60
        $region59: #{tpu_custom_call.1} parent=11 // pred_region
          %673 = vsyncadd [#allocation21], 0
          %s675 = sshll.u32 %s14, 4
          %s676 = int_to_ptr.hbm [resolvable:$true] %s675
          %s677 = sshll.u32 [#allocation20], 4
          %s678 = int_to_ptr.vmem [resolvable:$true] %s677
          %680 = dma.hbm_to_vmem [thread:$0]  %s676, 16, %s678, [#allocation21]
        $region60: #{tpu_custom_call.1} parent=11 // pred_fallthru
          _
        // Predicated region
        $region61: #{tpu_custom_call.1} parent=11 // pred_check
          %p681 = pneg %p392
        $region62: #{tpu_custom_call.1} parent=11 // pred_check_branch
          %683 = sbr.rel (%p681) target = $region64
        $region63: #{tpu_custom_call.1} parent=11 // pred_region
          %685 = vsyncadd [#allocation21], 0
          %s686 = sshll.u32 %s15, 4
          %s687 = int_to_ptr.hbm [resolvable:$true] %s686
          %s688 = sshll.u32 [#allocation22], 4
          %s689 = int_to_ptr.vmem [resolvable:$true] %s688
          %694 = dma.hbm_to_vmem [thread:$0]  %s687, 256, %s689, [#allocation21], 64, 64, 4
        $region64: #{tpu_custom_call.1} parent=11 // pred_fallthru
          _
        // Predicated region
        $region65: #{tpu_custom_call.1} parent=11 // pred_check
          %p695 = pneg %p413
        $region66: #{tpu_custom_call.1} parent=11 // pred_check_branch
          %697 = sbr.rel (%p695) target = $region68
        $region67: #{tpu_custom_call.1} parent=11 // pred_region
          %699 = vsyncadd [#allocation24], 0
          %s701 = sshll.u32 %s16, 4
          %s702 = int_to_ptr.hbm [resolvable:$true] %s701
          %s703 = sshll.u32 [#allocation23], 4
          %s704 = int_to_ptr.vmem [resolvable:$true] %s703
          %706 = dma.hbm_to_vmem [thread:$0]  %s702, 16, %s704, [#allocation24]
        $region68: #{tpu_custom_call.1} parent=11 // pred_fallthru
          _
        // Predicated region
        $region69: #{tpu_custom_call.1} parent=11 // pred_check
          %p707 = pneg %p434
        $region70: #{tpu_custom_call.1} parent=11 // pred_check_branch
          %709 = sbr.rel (%p707) target = $region72
        $region71: #{tpu_custom_call.1} parent=11 // pred_region
          %711 = vsyncadd [#allocation24], 0
          %s712 = sshll.u32 %s17, 4
          %s713 = int_to_ptr.hbm [resolvable:$true] %s712
          %s714 = sshll.u32 [#allocation25], 4
          %s715 = int_to_ptr.vmem [resolvable:$true] %s714
          %720 = dma.hbm_to_vmem [thread:$0]  %s713, 256, %s715, [#allocation24], 64, 64, 4
        $region72: #{tpu_custom_call.1} parent=11 // pred_fallthru
          _
        // Predicated region
        $region73: #{tpu_custom_call.1} parent=11 // pred_check
          %p721 = pneg %p455
        $region74: #{tpu_custom_call.1} parent=11 // pred_check_branch
          %723 = sbr.rel (%p721) target = $region76
        $region75: #{tpu_custom_call.1} parent=11 // pred_region
          %725 = vsyncadd [#allocation27], 0
          %s727 = sshll.u32 %s18, 4
          %s728 = int_to_ptr.hbm [resolvable:$true] %s727
          %s729 = sshll.u32 [#allocation26], 4
          %s730 = int_to_ptr.vmem [resolvable:$true] %s729
          %732 = dma.hbm_to_vmem [thread:$0]  %s728, 16, %s730, [#allocation27]
        $region76: #{tpu_custom_call.1} parent=11 // pred_fallthru
          _
        // Predicated region
        $region77: #{tpu_custom_call.1} parent=11 // pred_check
          %p733 = pneg %p476
        $region78: #{tpu_custom_call.1} parent=11 // pred_check_branch
          %735 = sbr.rel (%p733) target = $region80
        $region79: #{tpu_custom_call.1} parent=11 // pred_region
          _
        $region80: #{tpu_custom_call.1} parent=11 // pred_fallthru
          _
        // Predicated region
        $region81: #{tpu_custom_call.1} parent=11 // pred_check
          %p736 = pneg %p497
        $region82: #{tpu_custom_call.1} parent=11 // pred_check_branch
          %738 = sbr.rel (%p736) target = $region84
        $region83: #{tpu_custom_call.1} parent=11 // pred_region
          _
        $region84: #{tpu_custom_call.1} parent=11 // pred_fallthru
          _
      $region12: #{tpu_custom_call.1} parent=5 // pred_fallthru
        _
      %p739 = scmp.lt.s32.totalorder %s41, 2
      // Predicated region
      $region85: #{tpu_custom_call.1} parent=5 // pred_check
        %p740 = pneg %p739
      $region86: #{tpu_custom_call.1} parent=5 // pred_check_branch
        %742 = sbr.rel (%p740) target = $region88
      $region87: #{tpu_custom_call.1} parent=5 // pred_region
        // Predicated region
        $region89: #{tpu_custom_call.1} parent=87 // pred_check
          %p743 = pneg %p61
        $region90: #{tpu_custom_call.1} parent=87 // pred_check_branch
          %745 = sbr.rel (%p743) target = $region92
        $region91: #{tpu_custom_call.1} parent=87 // pred_region
          %p746 = scmp.lt.s32.totalorder %s41, 1
          %s747 = scalar_select %p746, %s41, 1
          %s748 = scalar_lea.vmem %s0, %s747
        $region92: #{tpu_custom_call.1} parent=87 // pred_fallthru
          _
        // Predicated region
        $region93: #{tpu_custom_call.1} parent=87 // pred_check
          %p749 = pneg %p87
        $region94: #{tpu_custom_call.1} parent=87 // pred_check_branch
          %751 = sbr.rel (%p749) target = $region96
        $region95: #{tpu_custom_call.1} parent=87 // pred_region
          %p752 = scmp.lt.s32.totalorder %s41, 1
          %s753 = scalar_select %p752, %s41, 1
          %s754 = smul.addr %s753, 8
          %s755 = scalar_lea.vmem %s1, %s754
        $region96: #{tpu_custom_call.1} parent=87 // pred_fallthru
          _
        // Predicated region
        $region97: #{tpu_custom_call.1} parent=87 // pred_check
          %p756 = pneg %p113
        $region98: #{tpu_custom_call.1} parent=87 // pred_check_branch
          %758 = sbr.rel (%p756) target = $region100
        $region99: #{tpu_custom_call.1} parent=87 // pred_region
          %s759 = sand.u32 %s103, 1
          %s760 = scalar_lea.sflag [#allocation3], %s759
          %s761 = sand.u32 %s103, 1
          %s762 = smul.addr %s761, 8
          %s763 = scalar_lea.vmem [#allocation2], %s762
          %765 = vsyncadd %s760, 0
          %s766 = smul.addr %s41, 8
          %s767 = scalar_lea.hbm %s2, %s766
          %s769 = sshll.u32 %s767, 4
          %s770 = int_to_ptr.hbm [resolvable:$true] %s769
          %s771 = sshll.u32 %s763, 4
          %s772 = int_to_ptr.vmem [resolvable:$true] %s771
          %774 = dma.hbm_to_vmem [thread:$0]  %s770, 128, %s772, %s760
        $region100: #{tpu_custom_call.1} parent=87 // pred_fallthru
          _
      $region88: #{tpu_custom_call.1} parent=5 // pred_fallthru
        _
      %p775 = scmp.le.s32.totalorder 1, %s41
      %p776 = scmp.lt.s32.totalorder %s41, 3
      %p777 = pnand %p775, %p776
      %p778 = pneg %p777
      // Predicated region
      $region101: #{tpu_custom_call.1} parent=5 // pred_check
        _
      $region102: #{tpu_custom_call.1} parent=5 // pred_check_branch
        %780 = sbr.rel (%p777) target = $region104
      $region103: #{tpu_custom_call.1} parent=5 // pred_region
        %s781 = ssub.s32 %s41, 1
        %s782 = sand.u32 %s106, 1
        %s783 = scalar_lea.sflag [#allocation3], %s782
        %s784 = sand.u32 %s106, 1
        %s785 = smul.addr %s784, 8
        %s786 = scalar_lea.vmem [#allocation2], %s785
        // Predicated region
        $region105: #{tpu_custom_call.1} parent=103 // pred_check
          %p787 = pneg %p119
        $region106: #{tpu_custom_call.1} parent=103 // pred_check_branch
          %789 = sbr.rel (%p787) target = $region108
        $region107: #{tpu_custom_call.1} parent=103 // pred_region
          %791 = dma.done %s783, 128
        $region108: #{tpu_custom_call.1} parent=103 // pred_fallthru
          _
        // Predicated region
        $region109: #{tpu_custom_call.1} parent=103 // pred_check
          %p792 = pneg %p161
        $region110: #{tpu_custom_call.1} parent=103 // pred_check_branch
          %794 = sbr.rel (%p792) target = $region112
        $region111: #{tpu_custom_call.1} parent=103 // pred_region
          %796 = dma.done [#allocation6], 32
        $region112: #{tpu_custom_call.1} parent=103 // pred_fallthru
          _
        // Predicated region
        $region113: #{tpu_custom_call.1} parent=103 // pred_check
          %p797 = pneg %p182
        $region114: #{tpu_custom_call.1} parent=103 // pred_check_branch
          %799 = sbr.rel (%p797) target = $region116
        $region115: #{tpu_custom_call.1} parent=103 // pred_region
          %801 = dma.done [#allocation6], 64
        $region116: #{tpu_custom_call.1} parent=103 // pred_fallthru
          _
        // Predicated region
        $region117: #{tpu_custom_call.1} parent=103 // pred_check
          %p802 = pneg %p203
        $region118: #{tpu_custom_call.1} parent=103 // pred_check_branch
          %804 = sbr.rel (%p802) target = $region120
        $region119: #{tpu_custom_call.1} parent=103 // pred_region
          %806 = dma.done [#allocation9], 64
        $region120: #{tpu_custom_call.1} parent=103 // pred_fallthru
          _
        // Predicated region
        $region121: #{tpu_custom_call.1} parent=103 // pred_check
          %p807 = pneg %p224
        $region122: #{tpu_custom_call.1} parent=103 // pred_check_branch
          %809 = sbr.rel (%p807) target = $region124
        $region123: #{tpu_custom_call.1} parent=103 // pred_region
          %811 = dma.done [#allocation9], 256
        $region124: #{tpu_custom_call.1} parent=103 // pred_fallthru
          _
        // Predicated region
        $region125: #{tpu_custom_call.1} parent=103 // pred_check
          %p812 = pneg %p245
        $region126: #{tpu_custom_call.1} parent=103 // pred_check_branch
          %814 = sbr.rel (%p812) target = $region128
        $region127: #{tpu_custom_call.1} parent=103 // pred_region
          %816 = dma.done [#allocation12], 16
        $region128: #{tpu_custom_call.1} parent=103 // pred_fallthru
          _
        // Predicated region
        $region129: #{tpu_custom_call.1} parent=103 // pred_check
          %p817 = pneg %p266
        $region130: #{tpu_custom_call.1} parent=103 // pred_check_branch
          %819 = sbr.rel (%p817) target = $region132
        $region131: #{tpu_custom_call.1} parent=103 // pred_region
          %821 = dma.done [#allocation12], 256
        $region132: #{tpu_custom_call.1} parent=103 // pred_fallthru
          _
        // Predicated region
        $region133: #{tpu_custom_call.1} parent=103 // pred_check
          %p822 = pneg %p287
        $region134: #{tpu_custom_call.1} parent=103 // pred_check_branch
          %824 = sbr.rel (%p822) target = $region136
        $region135: #{tpu_custom_call.1} parent=103 // pred_region
          %826 = dma.done [#allocation15], 16
        $region136: #{tpu_custom_call.1} parent=103 // pred_fallthru
          _
        // Predicated region
        $region137: #{tpu_custom_call.1} parent=103 // pred_check
          %p827 = pneg %p308
        $region138: #{tpu_custom_call.1} parent=103 // pred_check_branch
          %829 = sbr.rel (%p827) target = $region140
        $region139: #{tpu_custom_call.1} parent=103 // pred_region
          %831 = dma.done [#allocation15], 256
        $region140: #{tpu_custom_call.1} parent=103 // pred_fallthru
          _
        // Predicated region
        $region141: #{tpu_custom_call.1} parent=103 // pred_check
          %p832 = pneg %p329
        $region142: #{tpu_custom_call.1} parent=103 // pred_check_branch
          %834 = sbr.rel (%p832) target = $region144
        $region143: #{tpu_custom_call.1} parent=103 // pred_region
          %836 = dma.done [#allocation18], 16
        $region144: #{tpu_custom_call.1} parent=103 // pred_fallthru
          _
        // Predicated region
        $region145: #{tpu_custom_call.1} parent=103 // pred_check
          %p837 = pneg %p350
        $region146: #{tpu_custom_call.1} parent=103 // pred_check_branch
          %839 = sbr.rel (%p837) target = $region148
        $region147: #{tpu_custom_call.1} parent=103 // pred_region
          %841 = dma.done [#allocation18], 256
        $region148: #{tpu_custom_call.1} parent=103 // pred_fallthru
          _
        // Predicated region
        $region149: #{tpu_custom_call.1} parent=103 // pred_check
          %p842 = pneg %p371
        $region150: #{tpu_custom_call.1} parent=103 // pred_check_branch
          %844 = sbr.rel (%p842) target = $region152
        $region151: #{tpu_custom_call.1} parent=103 // pred_region
          %846 = dma.done [#allocation21], 16
        $region152: #{tpu_custom_call.1} parent=103 // pred_fallthru
          _
        // Predicated region
        $region153: #{tpu_custom_call.1} parent=103 // pred_check
          %p847 = pneg %p392
        $region154: #{tpu_custom_call.1} parent=103 // pred_check_branch
          %849 = sbr.rel (%p847) target = $region156
        $region155: #{tpu_custom_call.1} parent=103 // pred_region
          %851 = dma.done [#allocation21], 256
        $region156: #{tpu_custom_call.1} parent=103 // pred_fallthru
          _
        // Predicated region
        $region157: #{tpu_custom_call.1} parent=103 // pred_check
          %p852 = pneg %p413
        $region158: #{tpu_custom_call.1} parent=103 // pred_check_branch
          %854 = sbr.rel (%p852) target = $region160
        $region159: #{tpu_custom_call.1} parent=103 // pred_region
          %856 = dma.done [#allocation24], 16
        $region160: #{tpu_custom_call.1} parent=103 // pred_fallthru
          _
        // Predicated region
        $region161: #{tpu_custom_call.1} parent=103 // pred_check
          %p857 = pneg %p434
        $region162: #{tpu_custom_call.1} parent=103 // pred_check_branch
          %859 = sbr.rel (%p857) target = $region164
        $region163: #{tpu_custom_call.1} parent=103 // pred_region
          %861 = dma.done [#allocation24], 256
        $region164: #{tpu_custom_call.1} parent=103 // pred_fallthru
          _
        // Predicated region
        $region165: #{tpu_custom_call.1} parent=103 // pred_check
          %p862 = pneg %p455
        $region166: #{tpu_custom_call.1} parent=103 // pred_check_branch
          %864 = sbr.rel (%p862) target = $region168
        $region167: #{tpu_custom_call.1} parent=103 // pred_region
          %866 = dma.done [#allocation27], 16
        $region168: #{tpu_custom_call.1} parent=103 // pred_fallthru
          _
        %p867 = scmp.lt.s32.totalorder %s46, 1
        %s868 = scalar_select %p867, %s46, 1
        %s869 = scalar_lea.vmem %s0, %s868
        %p870 = pneg %p67
        %p871 = pneg %p64
        %p872 = scmp.lt.s32.totalorder %s46, 1
        %s873 = scalar_select %p872, %s46, 1
        %s874 = smul.addr %s873, 8
        %s875 = scalar_lea.vmem %s1, %s874
        %p876 = pneg %p93
        %p877 = pneg %p90
        %s878 = sand.u32 %s106, 1
        %s879 = scalar_lea.sflag [#allocation3], %s878
        %s880 = sand.u32 %s106, 1
        %s881 = smul.addr %s880, 8
        %s882 = scalar_lea.vmem [#allocation2], %s881
        %p883 = pneg %p119
        %p884 = pneg %p116
        %p885 = pneg %p140
        %p886 = pneg %p137
        %p887 = pneg %p161
        %p888 = pneg %p158
        %p889 = pneg %p182
        %p890 = pneg %p179
        %p891 = pneg %p203
        %p892 = pneg %p200
        %p893 = pneg %p224
        %p894 = pneg %p221
        %p895 = pneg %p245
        %p896 = pneg %p242
        %p897 = pneg %p266
        %p898 = pneg %p263
        %p899 = pneg %p287
        %p900 = pneg %p284
        %p901 = pneg %p308
        %p902 = pneg %p305
        %p903 = pneg %p329
        %p904 = pneg %p326
        %p905 = pneg %p350
        %p906 = pneg %p347
        %p907 = pneg %p371
        %p908 = pneg %p368
        %p909 = pneg %p392
        %p910 = pneg %p389
        %p911 = pneg %p413
        %p912 = pneg %p410
        %p913 = pneg %p434
        %p914 = pneg %p431
        %p915 = pneg %p455
        %p916 = pneg %p452
        %p917 = pneg %p476
        %p918 = pneg %p473
        %p919 = pneg %p497
        %p920 = pneg %p494
        %p921 = pneg %p523
        %p922 = pneg %p520
        %s923 = sand.u32 %s510, 1
        %s924 = scalar_lea.sflag [#allocation4], %s923
        %s925 = sand.u32 %s510, 1
        %s926 = smul.addr %s925, 8
        %s927 = scalar_lea.vmem [#allocation28], %s926
        %p928 = scmp.lt.s32.totalorder %s46, 1
        %s929 = scalar_select %p928, %s46, 1
        %s930 = scalar_lea.vmem %s0, %s929
        %p931 = scmp.lt.s32.totalorder %s46, 1
        %s932 = scalar_select %p931, %s46, 1
        %s933 = smul.addr %s932, 8
        %s934 = scalar_lea.vmem %s1, %s933
        %v936 = vld [vmem:[%s934] sm:$0xff]
        %v937 = vld [vmem:[%s786] sm:$0xff]
        %v938 = vld [vmem:[%s930] sm:$0x1]
        %v939 = vmax.f32 %v938, 0.0
        %v940 = vand.u32 2147483647, %v938
        %v941 = vsub.f32 0.0, %v940
        %v942 = vmul.f32 %v941, 1.442695
        %v943 = vpow.pop %v942
        %v944 = vadd.f32 %v943, 1.0
        %v945 = vlog2.pop %v944
        %v946 = vmul.f32 %v945, 0.6931472
        %v947 = vmul.f32 -0.5, %v943
        %v948 = vadd.f32 %v947, 1.0
        %v949 = vmul.f32 %v948, %v943
        %v950 = vand.u32 2147483647, %v943
        %vm951 = vcmp.lt.f32.partialorder %v950, 0.0004427343
        %v952 = vsel %vm951, %v949, %v946
        %v953 = vadd.f32 %v939, %v952
        %v954 = vtanh.pop %v953
        %v955 = vmul.f32 %v938, %v954
        %v956 = vpack.c.bf16 %v955, %v955
        %v957 = vld [vmem:[%s3] sm:$0xff]
        %v958 = vld [vmem:[%s3 + $0x8] sm:$0xff]
        %v959 = vld [vmem:[%s3 + $0x10] sm:$0xff]
        %v960 = vld [vmem:[%s3 + $0x18] sm:$0xff]
        %v961 = vld [vmem:[#allocation5] sm:$0x3]
        %v966 = vunpack.c.l.b16 %v957
        %v967 = vunpack.c.h.b16 %v957
        %v968 = vunpack.c.l.b16 %v958
        %v969 = vunpack.c.h.b16 %v958
        %v970 = vunpack.c.l.b16 %v959
        %v971 = vunpack.c.h.b16 %v959
        %v972 = vunpack.c.l.b16 %v960
        %v973 = vunpack.c.h.b16 %v960
        %v974 = vpack.c.b16 %v968, %v966
        %v975 = vpack.c.b16 %v969, %v967
        %v976 = vpack.c.b16 %v972, %v970
        %v977 = vpack.c.b16 %v973, %v971
        %v983 = vperm.slane %v961, 0
        %v984 = vperm.slane %v961, 1
        %vm987 = vcmask 261120
        %v989 = vsel %vm987, %v956, 0
        %991 = vmatpush.bf16.msra.mxu0 0
        %992 = vmatpush.bf16.msra.mxu0 0
        %993 = vmatpush.bf16.msra.mxu0 0
        %994 = vmatpush.bf16.msra.mxu0 0
        %995 = vmatpush.bf16.msra.mxu0 0
        %996 = vmatpush.bf16.msra.mxu0 0
        %997 = vmatpush.bf16.msra.mxu0 %v976
        %998 = vmatpush.bf16.msra.mxu0 %v974
        %999 = vmatmul.bf16.gmra.mxu0 %v989
        %v1000 = vpop.f32.mrf.mxu0
        %v1001 = vadd.f32 %v983, %v1000
        %v1002 = vpop.f32.mrf.mxu0
        %1003 = vdwg.mxu0
        %1004 = vmatpush.bf16.msra.mxu0 0
        %1005 = vmatpush.bf16.msra.mxu0 0
        %1006 = vmatpush.bf16.msra.mxu0 0
        %1007 = vmatpush.bf16.msra.mxu0 0
        %1008 = vmatpush.bf16.msra.mxu0 0
        %1009 = vmatpush.bf16.msra.mxu0 0
        %1010 = vmatpush.bf16.msra.mxu0 %v977
        %1011 = vmatpush.bf16.msra.mxu0 %v975
        %1012 = vmatmul.bf16.gmra.mxu0 %v989
        %v1013 = vpop.f32.mrf.mxu0
        %v1014 = vadd.f32 %v984, %v1013
        %v1015 = vpop.f32.mrf.mxu0
        %1016 = vdwg.mxu0
        %v1017 = vld [vmem:[#allocation7] sm:$0x7]
        %v1018 = vld [vmem:[#allocation8] sm:$0x7]
        %v1019 = vsel %vm987, %v936, 0.0
        %1020 = vadd.xlane.f32.xlu0 %v1019
        %v1021 = vpop.xlane.xlu0 %1020
        %v1022 = vrcp.pop 32.0
        %v1023 = vmul.f32 32.0, %v1022
        %v1024 = vsub.f32 1.0, %v1023
        %v1025 = vmul.f32 %v1022, %v1024
        %v1026 = vadd.f32 %v1022, %v1025
        %vm1027 = vweird.f32 %v1022
        %v1028 = vsel %vm1027, %v1022, %v1026
        %v1029 = vmul.f32 %v1021, %v1028
        %v1030 = vsub.f32 %v936, %v1029
        %v1031 = vmul.f32 %v1030, %v1030
        %v1032 = vsel %vm987, %v1031, 0.0
        %1033 = vadd.xlane.f32.xlu0 %v1032
        %v1034 = vpop.xlane.xlu0 %1033
        %v1035 = vmul.f32 %v1034, %v1028
        %v1036 = vadd.f32 %v1035, 1e-05
        %v1037 = vrsqrt.pop %v1036
        %v1038 = vmul.f32 %v1037, %v1036
        %v1039 = vmul.f32 %v1038, %v1037
        %v1040 = vmul.f32 0.5, %v1039
        %v1041 = vsub.f32 1.5, %v1040
        %v1042 = vmul.f32 %v1037, %v1041
        %vm1043 = vweird.f32 %v1036
        %vm1044 = vweird.f32 %v1037
        %vm1045 = vmor %vm1043, %vm1044
        %v1046 = vsel %vm1045, %v1037, %v1042
        %v1047 = vmul.f32 %v1030, %v1046
        %v1048 = vperm.slane %v1017, 0
        %v1049 = vmul.f32 %v1047, %v1048
        %v1050 = vperm.slane %v1018, 0
        %v1051 = vadd.f32 %v1049, %v1050
        %v1052 = vpack.c.bf16 %v1051, %v1051
        %v1053 = vld [vmem:[#allocation10] sm:$0xf]
        %v1054 = vld [vmem:[#allocation10 + $0x4] sm:$0xf]
        %v1055 = vld [vmem:[#allocation10 + $0x8] sm:$0xf]
        %v1056 = vld [vmem:[#allocation10 + $0xc] sm:$0xf]
        %v1057 = vld [vmem:[#allocation11] sm:$0x1]
        %v1059 = vperm.slane %v1057, 0
        %v1065 = vunpack.c.l.b16 %v1053
        %v1066 = vunpack.c.l.b16 %v1054
        %v1067 = vunpack.c.l.b16 %v1055
        %v1068 = vunpack.c.l.b16 %v1056
        %v1069 = vpack.c.b16 %v1066, %v1065
        %v1070 = vpack.c.b16 %v1068, %v1067
        %v1074 = vsel %vm987, %v1052, 0
        %1076 = vmatpush.bf16.msra.mxu0 0
        %1077 = vmatpush.bf16.msra.mxu0 0
        %1078 = vmatpush.bf16.msra.mxu0 0
        %1079 = vmatpush.bf16.msra.mxu0 0
        %1080 = vmatpush.bf16.msra.mxu0 0
        %1081 = vmatpush.bf16.msra.mxu0 0
        %1082 = vmatpush.bf16.msra.mxu0 %v1070
        %1083 = vmatpush.bf16.msra.mxu0 %v1069
        %1084 = vmatmul.bf16.gmra.mxu0 %v1074
        %v1085 = vpop.f32.mrf.mxu0
        %v1086 = vadd.f32 %v1059, %v1085
        %v1087 = vpop.f32.mrf.mxu0
        %1088 = vdwg.mxu0
        %v1089 = vpack.c.bf16 %v1086, %v1086
        %1091 = vrot.lane.b32.xlu0 %v1086, 96
        %v1092 = vpop.permute.xlu0 %1091
        %1094 = vxpose.xlu0.b32.start [1/16] %v1092, 128
        %1095 = vxpose.xlu0.b32.cont [2/16] 0.0, 128
        %1096 = vxpose.xlu0.b32.cont [3/16] 0.0, 128
        %1097 = vxpose.xlu0.b32.cont [4/16] 0.0, 128
        %1098 = vxpose.xlu0.b32.cont [5/16] 0.0, 128
        %1099 = vxpose.xlu0.b32.cont [6/16] 0.0, 128
        %1100 = vxpose.xlu0.b32.cont [7/16] 0.0, 128
        %1101 = vxpose.xlu0.b32.cont [8/16] 0.0, 128
        %1102 = vxpose.xlu0.b32.cont [9/16] 0.0, 128
        %1103 = vxpose.xlu0.b32.cont [10/16] 0.0, 128
        %1104 = vxpose.xlu0.b32.cont [11/16] 0.0, 128
        %1105 = vxpose.xlu0.b32.cont [12/16] 0.0, 128
        %1106 = vxpose.xlu0.b32.cont [13/16] 0.0, 128
        %1107 = vxpose.xlu0.b32.cont [14/16] 0.0, 128
        %1108 = vxpose.xlu0.b32.cont [15/16] 0.0, 128
        %1109 = vxpose.xlu0.b32.end [16/16] 0.0, 128
        %v1110 = vpop.trf.xlu0
        %v1111 = vpop.trf.xlu0
        %v1112 = vpop.trf.xlu0
        %v1113 = vpop.trf.xlu0
        %v1114 = vpop.trf.xlu0
        %v1115 = vpop.trf.xlu0
        %v1116 = vpop.trf.xlu0
        %v1117 = vpop.trf.xlu0
        %v1118 = vpop.trf.xlu0
        %v1119 = vpop.trf.xlu0
        %v1120 = vpop.trf.xlu0
        %v1121 = vpop.trf.xlu0
        %v1122 = vpop.trf.xlu0
        %v1123 = vpop.trf.xlu0
        %v1124 = vpop.trf.xlu0
        %v1125 = vpop.trf.xlu0
        %v1126 = vpack.c.bf16 %v1110, %v1110
        %v1127 = vpack.c.bf16 %v1111, %v1111
        %v1128 = vpack.c.bf16 %v1112, %v1112
        %v1129 = vpack.c.bf16 %v1113, %v1113
        %vm1130 = vcmask 64512
        %v1132 = vsel %vm1130, %v1089, 0
        %vm1134 = vcmask 1043456
        %v1136 = vsel %vm1134, %v1126, 0
        %1138 = vmatpush.bf16.msra.mxu0 0
        %1139 = vmatpush.bf16.msra.mxu0 0
        %1140 = vmatpush.bf16.msra.mxu0 0
        %1141 = vmatpush.bf16.msra.mxu0 0
        %1142 = vmatpush.bf16.msra.mxu0 0
        %1143 = vmatpush.bf16.msra.mxu0 0
        %1144 = vmatpush.bf16.msra.mxu0 0
        %1145 = vmatpush.bf16.msra.mxu0 %v1136
        %1146 = vmatmul.bf16.gmra.mxu0 %v1132
        %v1147 = vpop.f32.mrf.mxu0
        %v1148 = vadd.f32 0.0, %v1147
        %v1149 = vpop.f32.mrf.mxu0
        %1150 = vdwg.mxu0
        %v1151 = vmul.f32 %v1148, 0.35355338
        %v1152 = vsel %vm1130, %v1151, -inf
        %1153 = vmax.xlane.f32.xlu0 %v1152
        %v1154 = vpop.xlane.xlu0 %1153
        %v1155 = vsub.f32 %v1151, %v1154
        %v1156 = vmul.f32 %v1155, 1.442695
        %v1157 = vpow.pop %v1156
        %v1158 = vsel %vm1130, %v1157, 0.0
        %1159 = vadd.xlane.f32.xlu0 %v1158
        %v1160 = vpop.xlane.xlu0 %1159
        %v1161 = vrcp.pop %v1160
        %v1162 = vmul.f32 %v1157, %v1161
        %v1163 = vpack.c.bf16 %v1162, %v1162
        %v1165 = vunpack.c.l.b16 %v1089
        %v1166 = vpack.c.b16 %v1165, %v1165
        %1167 = vrot.lane.b32.xlu0 %v1166, 64
        %v1168 = vpop.permute.xlu0 %1167
        %v1170 = vsel %vm1130, %v1163, 0
        %v1173 = vsel %vm1134, %v1168, 0
        %1175 = vmatpush.bf16.msra.mxu0 0
        %1176 = vmatpush.bf16.msra.mxu0 0
        %1177 = vmatpush.bf16.msra.mxu0 0
        %1178 = vmatpush.bf16.msra.mxu0 0
        %1179 = vmatpush.bf16.msra.mxu0 0
        %1180 = vmatpush.bf16.msra.mxu0 0
        %1181 = vmatpush.bf16.msra.mxu0 0
        %1182 = vmatpush.bf16.msra.mxu0 %v1173
        %1183 = vmatmul.bf16.gmra.mxu0 %v1170
        %v1184 = vpop.f32.mrf.mxu0
        %v1185 = vadd.f32 0.0, %v1184
        %v1186 = vpop.f32.mrf.mxu0
        %1187 = vdwg.mxu0
        %v1188 = vpack.c.bf16 %v1185, %v1185
        %v1189 = vld [vmem:[#allocation13] sm:$0xf]
        %1190 = vrot.lane.b32.xlu0 %v1166, 120
        %v1191 = vpop.permute.xlu0 %1190
        %v1193 = vsel %vm1130, %v1191, 0
        %v1196 = vsel %vm1134, %v1127, 0
        %1198 = vmatpush.bf16.msra.mxu0 0
        %1199 = vmatpush.bf16.msra.mxu0 0
        %1200 = vmatpush.bf16.msra.mxu0 0
        %1201 = vmatpush.bf16.msra.mxu0 0
        %1202 = vmatpush.bf16.msra.mxu0 0
        %1203 = vmatpush.bf16.msra.mxu0 0
        %1204 = vmatpush.bf16.msra.mxu0 0
        %1205 = vmatpush.bf16.msra.mxu0 %v1196
        %1206 = vmatmul.bf16.gmra.mxu0 %v1193
        %v1207 = vpop.f32.mrf.mxu0
        %v1208 = vadd.f32 0.0, %v1207
        %v1209 = vpop.f32.mrf.mxu0
        %1210 = vdwg.mxu0
        %v1211 = vmul.f32 %v1208, 0.35355338
        %v1212 = vsel %vm1130, %v1211, -inf
        %1213 = vmax.xlane.f32.xlu0 %v1212
        %v1214 = vpop.xlane.xlu0 %1213
        %v1215 = vsub.f32 %v1211, %v1214
        %v1216 = vmul.f32 %v1215, 1.442695
        %v1217 = vpow.pop %v1216
        %v1218 = vsel %vm1130, %v1217, 0.0
        %1219 = vadd.xlane.f32.xlu0 %v1218
        %v1220 = vpop.xlane.xlu0 %1219
        %v1221 = vrcp.pop %v1220
        %v1222 = vmul.f32 %v1217, %v1221
        %v1223 = vpack.c.bf16 %v1222, %v1222
        %1224 = vrot.lane.b32.xlu0 %v1166, 56
        %v1225 = vpop.permute.xlu0 %1224
        %v1227 = vsel %vm1130, %v1223, 0
        %v1230 = vsel %vm1134, %v1225, 0
        %1232 = vmatpush.bf16.msra.mxu0 0
        %1233 = vmatpush.bf16.msra.mxu0 0
        %1234 = vmatpush.bf16.msra.mxu0 0
        %1235 = vmatpush.bf16.msra.mxu0 0
        %1236 = vmatpush.bf16.msra.mxu0 0
        %1237 = vmatpush.bf16.msra.mxu0 0
        %1238 = vmatpush.bf16.msra.mxu0 0
        %1239 = vmatpush.bf16.msra.mxu0 %v1230
        %1240 = vmatmul.bf16.gmra.mxu0 %v1227
        %v1241 = vpop.f32.mrf.mxu0
        %v1242 = vadd.f32 0.0, %v1241
        %v1243 = vpop.f32.mrf.mxu0
        %1244 = vdwg.mxu0
        %v1245 = vpack.c.bf16 %v1242, %v1242
        %v1246 = vld [vmem:[#allocation13 + $0x4] sm:$0xf]
        %v1248 = vsel %vm1130, %v1245, 0
        %v1251 = vsel %vm1134, %v1246, 0
        %1253 = vmatpush.bf16.msra.mxu0 0
        %1254 = vmatpush.bf16.msra.mxu0 0
        %1255 = vmatpush.bf16.msra.mxu0 0
        %1256 = vmatpush.bf16.msra.mxu0 0
        %1257 = vmatpush.bf16.msra.mxu0 0
        %1258 = vmatpush.bf16.msra.mxu0 0
        %1259 = vmatpush.bf16.msra.mxu0 0
        %1260 = vmatpush.bf16.msra.mxu0 %v1251
        %1261 = vmatmul.bf16.gmra.mxu0 %v1248
        %v1262 = vpop.f32.mrf.mxu0
        %v1263 = vadd.f32 0.0, %v1262
        %v1264 = vpop.f32.mrf.mxu0
        %1265 = vdwg.mxu0
        %v1267 = vsel %vm1130, %v1188, 0
        %v1270 = vsel %vm1134, %v1189, 0
        %1272 = vmatpush.bf16.msra.mxu0 0
        %1273 = vmatpush.bf16.msra.mxu0 0
        %1274 = vmatpush.bf16.msra.mxu0 0
        %1275 = vmatpush.bf16.msra.mxu0 0
        %1276 = vmatpush.bf16.msra.mxu0 0
        %1277 = vmatpush.bf16.msra.mxu0 0
        %1278 = vmatpush.bf16.msra.mxu0 0
        %1279 = vmatpush.bf16.msra.mxu0 %v1270
        %1280 = vmatmul.bf16.gmra.mxu0 %v1267
        %v1281 = vpop.f32.mrf.mxu0
        %v1282 = vadd.f32 %v1263, %v1281
        %v1283 = vpop.f32.mrf.mxu0
        %1284 = vdwg.mxu0
        %1285 = vrot.lane.b32.xlu0 %v1166, 112
        %v1286 = vpop.permute.xlu0 %1285
        %v1288 = vsel %vm1130, %v1286, 0
        %v1291 = vsel %vm1134, %v1128, 0
        %1293 = vmatpush.bf16.msra.mxu0 0
        %1294 = vmatpush.bf16.msra.mxu0 0
        %1295 = vmatpush.bf16.msra.mxu0 0
        %1296 = vmatpush.bf16.msra.mxu0 0
        %1297 = vmatpush.bf16.msra.mxu0 0
        %1298 = vmatpush.bf16.msra.mxu0 0
        %1299 = vmatpush.bf16.msra.mxu0 0
        %1300 = vmatpush.bf16.msra.mxu0 %v1291
        %1301 = vmatmul.bf16.gmra.mxu0 %v1288
        %v1302 = vpop.f32.mrf.mxu0
        %v1303 = vadd.f32 0.0, %v1302
        %v1304 = vpop.f32.mrf.mxu0
        %1305 = vdwg.mxu0
        %v1306 = vmul.f32 %v1303, 0.35355338
        %v1307 = vsel %vm1130, %v1306, -inf
        %1308 = vmax.xlane.f32.xlu0 %v1307
        %v1309 = vpop.xlane.xlu0 %1308
        %v1310 = vsub.f32 %v1306, %v1309
        %v1311 = vmul.f32 %v1310, 1.442695
        %v1312 = vpow.pop %v1311
        %v1313 = vsel %vm1130, %v1312, 0.0
        %1314 = vadd.xlane.f32.xlu0 %v1313
        %v1315 = vpop.xlane.xlu0 %1314
        %v1316 = vrcp.pop %v1315
        %v1317 = vmul.f32 %v1312, %v1316
        %v1318 = vpack.c.bf16 %v1317, %v1317
        %1319 = vrot.lane.b32.xlu0 %v1166, 48
        %v1320 = vpop.permute.xlu0 %1319
        %v1322 = vsel %vm1130, %v1318, 0
        %v1325 = vsel %vm1134, %v1320, 0
        %1327 = vmatpush.bf16.msra.mxu0 0
        %1328 = vmatpush.bf16.msra.mxu0 0
        %1329 = vmatpush.bf16.msra.mxu0 0
        %1330 = vmatpush.bf16.msra.mxu0 0
        %1331 = vmatpush.bf16.msra.mxu0 0
        %1332 = vmatpush.bf16.msra.mxu0 0
        %1333 = vmatpush.bf16.msra.mxu0 0
        %1334 = vmatpush.bf16.msra.mxu0 %v1325
        %1335 = vmatmul.bf16.gmra.mxu0 %v1322
        %v1336 = vpop.f32.mrf.mxu0
        %v1337 = vadd.f32 0.0, %v1336
        %v1338 = vpop.f32.mrf.mxu0
        %1339 = vdwg.mxu0
        %v1340 = vpack.c.bf16 %v1337, %v1337
        %v1341 = vld [vmem:[#allocation13 + $0x8] sm:$0xf]
        %v1343 = vsel %vm1130, %v1340, 0
        %v1346 = vsel %vm1134, %v1341, 0
        %1348 = vmatpush.bf16.msra.mxu0 0
        %1349 = vmatpush.bf16.msra.mxu0 0
        %1350 = vmatpush.bf16.msra.mxu0 0
        %1351 = vmatpush.bf16.msra.mxu0 0
        %1352 = vmatpush.bf16.msra.mxu0 0
        %1353 = vmatpush.bf16.msra.mxu0 0
        %1354 = vmatpush.bf16.msra.mxu0 0
        %1355 = vmatpush.bf16.msra.mxu0 %v1346
        %1356 = vmatmul.bf16.gmra.mxu0 %v1343
        %v1357 = vpop.f32.mrf.mxu0
        %v1358 = vadd.f32 0.0, %v1357
        %v1359 = vpop.f32.mrf.mxu0
        %1360 = vdwg.mxu0
        %v1361 = vadd.f32 %v1282, %v1358
        %1362 = vrot.lane.b32.xlu0 %v1166, 104
        %v1363 = vpop.permute.xlu0 %1362
        %v1365 = vsel %vm1130, %v1363, 0
        %v1368 = vsel %vm1134, %v1129, 0
        %1370 = vmatpush.bf16.msra.mxu0 0
        %1371 = vmatpush.bf16.msra.mxu0 0
        %1372 = vmatpush.bf16.msra.mxu0 0
        %1373 = vmatpush.bf16.msra.mxu0 0
        %1374 = vmatpush.bf16.msra.mxu0 0
        %1375 = vmatpush.bf16.msra.mxu0 0
        %1376 = vmatpush.bf16.msra.mxu0 0
        %1377 = vmatpush.bf16.msra.mxu0 %v1368
        %1378 = vmatmul.bf16.gmra.mxu0 %v1365
        %v1379 = vpop.f32.mrf.mxu0
        %v1380 = vadd.f32 0.0, %v1379
        %v1381 = vpop.f32.mrf.mxu0
        %1382 = vdwg.mxu0
        %v1383 = vmul.f32 %v1380, 0.35355338
        %v1384 = vsel %vm1130, %v1383, -inf
        %1385 = vmax.xlane.f32.xlu0 %v1384
        %v1386 = vpop.xlane.xlu0 %1385
        %v1387 = vsub.f32 %v1383, %v1386
        %v1388 = vmul.f32 %v1387, 1.442695
        %v1389 = vpow.pop %v1388
        %v1390 = vsel %vm1130, %v1389, 0.0
        %1391 = vadd.xlane.f32.xlu0 %v1390
        %v1392 = vpop.xlane.xlu0 %1391
        %v1393 = vrcp.pop %v1392
        %v1394 = vmul.f32 %v1389, %v1393
        %v1395 = vpack.c.bf16 %v1394, %v1394
        %1396 = vrot.lane.b32.xlu0 %v1166, 40
        %v1397 = vpop.permute.xlu0 %1396
        %v1399 = vsel %vm1130, %v1395, 0
        %v1402 = vsel %vm1134, %v1397, 0
        %1404 = vmatpush.bf16.msra.mxu0 0
        %1405 = vmatpush.bf16.msra.mxu0 0
        %1406 = vmatpush.bf16.msra.mxu0 0
        %1407 = vmatpush.bf16.msra.mxu0 0
        %1408 = vmatpush.bf16.msra.mxu0 0
        %1409 = vmatpush.bf16.msra.mxu0 0
        %1410 = vmatpush.bf16.msra.mxu0 0
        %1411 = vmatpush.bf16.msra.mxu0 %v1402
        %1412 = vmatmul.bf16.gmra.mxu0 %v1399
        %v1413 = vpop.f32.mrf.mxu0
        %v1414 = vadd.f32 0.0, %v1413
        %v1415 = vpop.f32.mrf.mxu0
        %1416 = vdwg.mxu0
        %v1417 = vpack.c.bf16 %v1414, %v1414
        %v1418 = vld [vmem:[#allocation13 + $0xc] sm:$0xf]
        %v1420 = vsel %vm1130, %v1417, 0
        %v1423 = vsel %vm1134, %v1418, 0
        %1425 = vmatpush.bf16.msra.mxu0 0
        %1426 = vmatpush.bf16.msra.mxu0 0
        %1427 = vmatpush.bf16.msra.mxu0 0
        %1428 = vmatpush.bf16.msra.mxu0 0
        %1429 = vmatpush.bf16.msra.mxu0 0
        %1430 = vmatpush.bf16.msra.mxu0 0
        %1431 = vmatpush.bf16.msra.mxu0 0
        %1432 = vmatpush.bf16.msra.mxu0 %v1423
        %1433 = vmatmul.bf16.gmra.mxu0 %v1420
        %v1434 = vpop.f32.mrf.mxu0
        %v1435 = vadd.f32 0.0, %v1434
        %v1436 = vpop.f32.mrf.mxu0
        %1437 = vdwg.mxu0
        %v1438 = vadd.f32 %v1361, %v1435
        %v1439 = vld [vmem:[#allocation14] sm:$0x1]
        %v1441 = vperm.slane %v1439, 0
        %v1443 = vadd.f32 %v1438, %v1441
        %v1444 = vadd.f32 %v1001, 1.0
        %v1445 = vperm.slane %v1444, 0
        %v1446 = vmul.f32 %v1445, %v1443
        %v1447 = vperm.slane %v1001, 0
        %1449 = vrot.lane.b32.xlu0 %v1447, 96
        %v1450 = vpop.permute.xlu0 %1449
        %v1452 = vadd.f32 %v1446, %v1450
        %v1453 = vadd.f32 %v936, %v1452
        %v1454 = vsel %vm987, %v1453, 0.0
        %1455 = vadd.xlane.f32.xlu0 %v1454
        %v1456 = vpop.xlane.xlu0 %1455
        %v1457 = vmul.f32 %v1456, %v1028
        %v1458 = vsub.f32 %v1453, %v1457
        %v1459 = vmul.f32 %v1458, %v1458
        %v1460 = vsel %vm987, %v1459, 0.0
        %1461 = vadd.xlane.f32.xlu0 %v1460
        %v1462 = vpop.xlane.xlu0 %1461
        %v1463 = vmul.f32 %v1462, %v1028
        %v1464 = vadd.f32 %v1463, 1e-05
        %v1465 = vrsqrt.pop %v1464
        %v1466 = vmul.f32 %v1465, %v1464
        %v1467 = vmul.f32 %v1466, %v1465
        %v1468 = vmul.f32 0.5, %v1467
        %v1469 = vsub.f32 1.5, %v1468
        %v1470 = vmul.f32 %v1465, %v1469
        %vm1471 = vweird.f32 %v1464
        %vm1472 = vweird.f32 %v1465
        %vm1473 = vmor %vm1471, %vm1472
        %v1474 = vsel %vm1473, %v1465, %v1470
        %v1475 = vmul.f32 %v1458, %v1474
        %v1476 = vperm.slane %v1017, 1
        %v1477 = vmul.f32 %v1475, %v1476
        %v1478 = vperm.slane %v1018, 1
        %v1479 = vadd.f32 %v1477, %v1478
        %v1480 = vpack.c.bf16 %v1479, %v1479
        %v1481 = vld [vmem:[#allocation16] sm:$0xf]
        %v1482 = vld [vmem:[#allocation16 + $0x4] sm:$0xf]
        %v1483 = vld [vmem:[#allocation16 + $0x8] sm:$0xf]
        %v1484 = vld [vmem:[#allocation16 + $0xc] sm:$0xf]
        %v1485 = vld [vmem:[#allocation17] sm:$0x1]
        %v1487 = vperm.slane %v1485, 0
        %v1493 = vunpack.c.l.b16 %v1481
        %v1494 = vunpack.c.l.b16 %v1482
        %v1495 = vunpack.c.l.b16 %v1483
        %v1496 = vunpack.c.l.b16 %v1484
        %v1497 = vpack.c.b16 %v1494, %v1493
        %v1498 = vpack.c.b16 %v1496, %v1495
        %v1502 = vsel %vm987, %v1480, 0
        %1504 = vmatpush.bf16.msra.mxu0 0
        %1505 = vmatpush.bf16.msra.mxu0 0
        %1506 = vmatpush.bf16.msra.mxu0 0
        %1507 = vmatpush.bf16.msra.mxu0 0
        %1508 = vmatpush.bf16.msra.mxu0 0
        %1509 = vmatpush.bf16.msra.mxu0 0
        %1510 = vmatpush.bf16.msra.mxu0 %v1498
        %1511 = vmatpush.bf16.msra.mxu0 %v1497
        %1512 = vmatmul.bf16.gmra.mxu0 %v1502
        %v1513 = vpop.f32.mrf.mxu0
        %v1514 = vadd.f32 %v1487, %v1513
        %v1515 = vpop.f32.mrf.mxu0
        %1516 = vdwg.mxu0
        %v1517 = vpack.c.bf16 %v1514, %v1514
        %v1518 = vpack.c.bf16 %v937, %v937
        %v1519 = vld [vmem:[#allocation19] sm:$0xf]
        %v1520 = vld [vmem:[#allocation19 + $0x4] sm:$0xf]
        %v1521 = vld [vmem:[#allocation19 + $0x8] sm:$0xf]
        %v1522 = vld [vmem:[#allocation19 + $0xc] sm:$0xf]
        %v1523 = vld [vmem:[#allocation20] sm:$0x1]
        %v1525 = vperm.slane %v1523, 0
        %v1531 = vunpack.c.l.b16 %v1519
        %v1532 = vunpack.c.l.b16 %v1520
        %v1533 = vunpack.c.l.b16 %v1521
        %v1534 = vunpack.c.l.b16 %v1522
        %v1535 = vpack.c.b16 %v1532, %v1531
        %v1536 = vpack.c.b16 %v1534, %v1533
        %v1540 = vsel %vm987, %v1518, 0
        %1542 = vmatpush.bf16.msra.mxu0 0
        %1543 = vmatpush.bf16.msra.mxu0 0
        %1544 = vmatpush.bf16.msra.mxu0 0
        %1545 = vmatpush.bf16.msra.mxu0 0
        %1546 = vmatpush.bf16.msra.mxu0 0
        %1547 = vmatpush.bf16.msra.mxu0 0
        %1548 = vmatpush.bf16.msra.mxu0 %v1536
        %1549 = vmatpush.bf16.msra.mxu0 %v1535
        %1550 = vmatmul.bf16.gmra.mxu0 %v1540
        %v1551 = vpop.f32.mrf.mxu0
        %v1552 = vadd.f32 %v1525, %v1551
        %v1553 = vpop.f32.mrf.mxu0
        %1554 = vdwg.mxu0
        %1555 = vxpose.xlu0.b32.start [1/16] %v1552, 128
        %1556 = vxpose.xlu0.b32.cont [2/16] 0.0, 128
        %1557 = vxpose.xlu0.b32.cont [3/16] 0.0, 128
        %1558 = vxpose.xlu0.b32.cont [4/16] 0.0, 128
        %1559 = vxpose.xlu0.b32.cont [5/16] 0.0, 128
        %1560 = vxpose.xlu0.b32.cont [6/16] 0.0, 128
        %1561 = vxpose.xlu0.b32.cont [7/16] 0.0, 128
        %1562 = vxpose.xlu0.b32.cont [8/16] 0.0, 128
        %1563 = vxpose.xlu0.b32.cont [9/16] 0.0, 128
        %1564 = vxpose.xlu0.b32.cont [10/16] 0.0, 128
        %1565 = vxpose.xlu0.b32.cont [11/16] 0.0, 128
        %1566 = vxpose.xlu0.b32.cont [12/16] 0.0, 128
        %1567 = vxpose.xlu0.b32.cont [13/16] 0.0, 128
        %1568 = vxpose.xlu0.b32.cont [14/16] 0.0, 128
        %1569 = vxpose.xlu0.b32.cont [15/16] 0.0, 128
        %1570 = vxpose.xlu0.b32.end [16/16] 0.0, 128
        %v1571 = vpop.trf.xlu0
        %v1572 = vpop.trf.xlu0
        %v1573 = vpop.trf.xlu0
        %v1574 = vpop.trf.xlu0
        %v1575 = vpop.trf.xlu0
        %v1576 = vpop.trf.xlu0
        %v1577 = vpop.trf.xlu0
        %v1578 = vpop.trf.xlu0
        %v1579 = vpop.trf.xlu0
        %v1580 = vpop.trf.xlu0
        %v1581 = vpop.trf.xlu0
        %v1582 = vpop.trf.xlu0
        %v1583 = vpop.trf.xlu0
        %v1584 = vpop.trf.xlu0
        %v1585 = vpop.trf.xlu0
        %v1586 = vpop.trf.xlu0
        %v1587 = vpack.c.bf16 %v1571, %v1571
        %v1588 = vpack.c.bf16 %v1572, %v1572
        %v1589 = vpack.c.bf16 %v1573, %v1573
        %v1590 = vpack.c.bf16 %v1574, %v1574
        %v1591 = vpack.c.bf16 %v1552, %v1552
        %v1593 = vsel %vm1130, %v1517, 0
        %v1596 = vsel %vm1134, %v1587, 0
        %1598 = vmatpush.bf16.msra.mxu0 0
        %1599 = vmatpush.bf16.msra.mxu0 0
        %1600 = vmatpush.bf16.msra.mxu0 0
        %1601 = vmatpush.bf16.msra.mxu0 0
        %1602 = vmatpush.bf16.msra.mxu0 0
        %1603 = vmatpush.bf16.msra.mxu0 0
        %1604 = vmatpush.bf16.msra.mxu0 0
        %1605 = vmatpush.bf16.msra.mxu0 %v1596
        %1606 = vmatmul.bf16.gmra.mxu0 %v1593
        %v1607 = vpop.f32.mrf.mxu0
        %v1608 = vadd.f32 0.0, %v1607
        %v1609 = vpop.f32.mrf.mxu0
        %1610 = vdwg.mxu0
        %v1611 = vmul.f32 %v1608, 0.35355338
        %v1612 = vsel %vm1130, %v1611, -inf
        %1613 = vmax.xlane.f32.xlu0 %v1612
        %v1614 = vpop.xlane.xlu0 %1613
        %v1615 = vsub.f32 %v1611, %v1614
        %v1616 = vmul.f32 %v1615, 1.442695
        %v1617 = vpow.pop %v1616
        %v1618 = vsel %vm1130, %v1617, 0.0
        %1619 = vadd.xlane.f32.xlu0 %v1618
        %v1620 = vpop.xlane.xlu0 %1619
        %v1621 = vrcp.pop %v1620
        %v1622 = vmul.f32 %v1617, %v1621
        %v1623 = vpack.c.bf16 %v1622, %v1622
        %v1625 = vunpack.c.l.b16 %v1591
        %v1626 = vpack.c.b16 %v1625, %v1625
        %1627 = vrot.lane.b32.xlu0 %v1626, 96
        %v1628 = vpop.permute.xlu0 %1627
        %v1630 = vsel %vm1130, %v1623, 0
        %v1633 = vsel %vm1134, %v1628, 0
        %1635 = vmatpush.bf16.msra.mxu0 0
        %1636 = vmatpush.bf16.msra.mxu0 0
        %1637 = vmatpush.bf16.msra.mxu0 0
        %1638 = vmatpush.bf16.msra.mxu0 0
        %1639 = vmatpush.bf16.msra.mxu0 0
        %1640 = vmatpush.bf16.msra.mxu0 0
        %1641 = vmatpush.bf16.msra.mxu0 0
        %1642 = vmatpush.bf16.msra.mxu0 %v1633
        %1643 = vmatmul.bf16.gmra.mxu0 %v1630
        %v1644 = vpop.f32.mrf.mxu0
        %v1645 = vadd.f32 0.0, %v1644
        %v1646 = vpop.f32.mrf.mxu0
        %1647 = vdwg.mxu0
        %v1648 = vpack.c.bf16 %v1645, %v1645
        %v1649 = vld [vmem:[#allocation22] sm:$0xf]
        %v1651 = vunpack.c.l.b16 %v1517
        %v1652 = vpack.c.b16 %v1651, %v1651
        %1653 = vrot.lane.b32.xlu0 %v1652, 120
        %v1654 = vpop.permute.xlu0 %1653
        %v1656 = vsel %vm1130, %v1654, 0
        %v1659 = vsel %vm1134, %v1588, 0
        %1661 = vmatpush.bf16.msra.mxu0 0
        %1662 = vmatpush.bf16.msra.mxu0 0
        %1663 = vmatpush.bf16.msra.mxu0 0
        %1664 = vmatpush.bf16.msra.mxu0 0
        %1665 = vmatpush.bf16.msra.mxu0 0
        %1666 = vmatpush.bf16.msra.mxu0 0
        %1667 = vmatpush.bf16.msra.mxu0 0
        %1668 = vmatpush.bf16.msra.mxu0 %v1659
        %1669 = vmatmul.bf16.gmra.mxu0 %v1656
        %v1670 = vpop.f32.mrf.mxu0
        %v1671 = vadd.f32 0.0, %v1670
        %v1672 = vpop.f32.mrf.mxu0
        %1673 = vdwg.mxu0
        %v1674 = vmul.f32 %v1671, 0.35355338
        %v1675 = vsel %vm1130, %v1674, -inf
        %1676 = vmax.xlane.f32.xlu0 %v1675
        %v1677 = vpop.xlane.xlu0 %1676
        %v1678 = vsub.f32 %v1674, %v1677
        %v1679 = vmul.f32 %v1678, 1.442695
        %v1680 = vpow.pop %v1679
        %v1681 = vsel %vm1130, %v1680, 0.0
        %1682 = vadd.xlane.f32.xlu0 %v1681
        %v1683 = vpop.xlane.xlu0 %1682
        %v1684 = vrcp.pop %v1683
        %v1685 = vmul.f32 %v1680, %v1684
        %v1686 = vpack.c.bf16 %v1685, %v1685
        %1687 = vrot.lane.b32.xlu0 %v1626, 88
        %v1688 = vpop.permute.xlu0 %1687
        %v1690 = vsel %vm1130, %v1686, 0
        %v1693 = vsel %vm1134, %v1688, 0
        %1695 = vmatpush.bf16.msra.mxu0 0
        %1696 = vmatpush.bf16.msra.mxu0 0
        %1697 = vmatpush.bf16.msra.mxu0 0
        %1698 = vmatpush.bf16.msra.mxu0 0
        %1699 = vmatpush.bf16.msra.mxu0 0
        %1700 = vmatpush.bf16.msra.mxu0 0
        %1701 = vmatpush.bf16.msra.mxu0 0
        %1702 = vmatpush.bf16.msra.mxu0 %v1693
        %1703 = vmatmul.bf16.gmra.mxu0 %v1690
        %v1704 = vpop.f32.mrf.mxu0
        %v1705 = vadd.f32 0.0, %v1704
        %v1706 = vpop.f32.mrf.mxu0
        %1707 = vdwg.mxu0
        %v1708 = vpack.c.bf16 %v1705, %v1705
        %v1709 = vld [vmem:[#allocation22 + $0x4] sm:$0xf]
        %v1711 = vsel %vm1130, %v1708, 0
        %v1714 = vsel %vm1134, %v1709, 0
        %1716 = vmatpush.bf16.msra.mxu0 0
        %1717 = vmatpush.bf16.msra.mxu0 0
        %1718 = vmatpush.bf16.msra.mxu0 0
        %1719 = vmatpush.bf16.msra.mxu0 0
        %1720 = vmatpush.bf16.msra.mxu0 0
        %1721 = vmatpush.bf16.msra.mxu0 0
        %1722 = vmatpush.bf16.msra.mxu0 0
        %1723 = vmatpush.bf16.msra.mxu0 %v1714
        %1724 = vmatmul.bf16.gmra.mxu0 %v1711
        %v1725 = vpop.f32.mrf.mxu0
        %v1726 = vadd.f32 0.0, %v1725
        %v1727 = vpop.f32.mrf.mxu0
        %1728 = vdwg.mxu0
        %v1730 = vsel %vm1130, %v1648, 0
        %v1733 = vsel %vm1134, %v1649, 0
        %1735 = vmatpush.bf16.msra.mxu0 0
        %1736 = vmatpush.bf16.msra.mxu0 0
        %1737 = vmatpush.bf16.msra.mxu0 0
        %1738 = vmatpush.bf16.msra.mxu0 0
        %1739 = vmatpush.bf16.msra.mxu0 0
        %1740 = vmatpush.bf16.msra.mxu0 0
        %1741 = vmatpush.bf16.msra.mxu0 0
        %1742 = vmatpush.bf16.msra.mxu0 %v1733
        %1743 = vmatmul.bf16.gmra.mxu0 %v1730
        %v1744 = vpop.f32.mrf.mxu0
        %v1745 = vadd.f32 %v1726, %v1744
        %v1746 = vpop.f32.mrf.mxu0
        %1747 = vdwg.mxu0
        %1748 = vrot.lane.b32.xlu0 %v1652, 112
        %v1749 = vpop.permute.xlu0 %1748
        %v1751 = vsel %vm1130, %v1749, 0
        %v1754 = vsel %vm1134, %v1589, 0
        %1756 = vmatpush.bf16.msra.mxu0 0
        %1757 = vmatpush.bf16.msra.mxu0 0
        %1758 = vmatpush.bf16.msra.mxu0 0
        %1759 = vmatpush.bf16.msra.mxu0 0
        %1760 = vmatpush.bf16.msra.mxu0 0
        %1761 = vmatpush.bf16.msra.mxu0 0
        %1762 = vmatpush.bf16.msra.mxu0 0
        %1763 = vmatpush.bf16.msra.mxu0 %v1754
        %1764 = vmatmul.bf16.gmra.mxu0 %v1751
        %v1765 = vpop.f32.mrf.mxu0
        %v1766 = vadd.f32 0.0, %v1765
        %v1767 = vpop.f32.mrf.mxu0
        %1768 = vdwg.mxu0
        %v1769 = vmul.f32 %v1766, 0.35355338
        %v1770 = vsel %vm1130, %v1769, -inf
        %1771 = vmax.xlane.f32.xlu0 %v1770
        %v1772 = vpop.xlane.xlu0 %1771
        %v1773 = vsub.f32 %v1769, %v1772
        %v1774 = vmul.f32 %v1773, 1.442695
        %v1775 = vpow.pop %v1774
        %v1776 = vsel %vm1130, %v1775, 0.0
        %1777 = vadd.xlane.f32.xlu0 %v1776
        %v1778 = vpop.xlane.xlu0 %1777
        %v1779 = vrcp.pop %v1778
        %v1780 = vmul.f32 %v1775, %v1779
        %v1781 = vpack.c.bf16 %v1780, %v1780
        %1782 = vrot.lane.b32.xlu0 %v1626, 80
        %v1783 = vpop.permute.xlu0 %1782
        %v1785 = vsel %vm1130, %v1781, 0
        %v1788 = vsel %vm1134, %v1783, 0
        %1790 = vmatpush.bf16.msra.mxu0 0
        %1791 = vmatpush.bf16.msra.mxu0 0
        %1792 = vmatpush.bf16.msra.mxu0 0
        %1793 = vmatpush.bf16.msra.mxu0 0
        %1794 = vmatpush.bf16.msra.mxu0 0
        %1795 = vmatpush.bf16.msra.mxu0 0
        %1796 = vmatpush.bf16.msra.mxu0 0
        %1797 = vmatpush.bf16.msra.mxu0 %v1788
        %1798 = vmatmul.bf16.gmra.mxu0 %v1785
        %v1799 = vpop.f32.mrf.mxu0
        %v1800 = vadd.f32 0.0, %v1799
        %v1801 = vpop.f32.mrf.mxu0
        %1802 = vdwg.mxu0
        %v1803 = vpack.c.bf16 %v1800, %v1800
        %v1804 = vld [vmem:[#allocation22 + $0x8] sm:$0xf]
        %v1806 = vsel %vm1130, %v1803, 0
        %v1809 = vsel %vm1134, %v1804, 0
        %1811 = vmatpush.bf16.msra.mxu0 0
        %1812 = vmatpush.bf16.msra.mxu0 0
        %1813 = vmatpush.bf16.msra.mxu0 0
        %1814 = vmatpush.bf16.msra.mxu0 0
        %1815 = vmatpush.bf16.msra.mxu0 0
        %1816 = vmatpush.bf16.msra.mxu0 0
        %1817 = vmatpush.bf16.msra.mxu0 0
        %1818 = vmatpush.bf16.msra.mxu0 %v1809
        %1819 = vmatmul.bf16.gmra.mxu0 %v1806
        %v1820 = vpop.f32.mrf.mxu0
        %v1821 = vadd.f32 0.0, %v1820
        %v1822 = vpop.f32.mrf.mxu0
        %1823 = vdwg.mxu0
        %v1824 = vadd.f32 %v1745, %v1821
        %1825 = vrot.lane.b32.xlu0 %v1652, 104
        %v1826 = vpop.permute.xlu0 %1825
        %v1828 = vsel %vm1130, %v1826, 0
        %v1831 = vsel %vm1134, %v1590, 0
        %1833 = vmatpush.bf16.msra.mxu0 0
        %1834 = vmatpush.bf16.msra.mxu0 0
        %1835 = vmatpush.bf16.msra.mxu0 0
        %1836 = vmatpush.bf16.msra.mxu0 0
        %1837 = vmatpush.bf16.msra.mxu0 0
        %1838 = vmatpush.bf16.msra.mxu0 0
        %1839 = vmatpush.bf16.msra.mxu0 0
        %1840 = vmatpush.bf16.msra.mxu0 %v1831
        %1841 = vmatmul.bf16.gmra.mxu0 %v1828
        %v1842 = vpop.f32.mrf.mxu0
        %v1843 = vadd.f32 0.0, %v1842
        %v1844 = vpop.f32.mrf.mxu0
        %1845 = vdwg.mxu0
        %v1846 = vmul.f32 %v1843, 0.35355338
        %v1847 = vsel %vm1130, %v1846, -inf
        %1848 = vmax.xlane.f32.xlu0 %v1847
        %v1849 = vpop.xlane.xlu0 %1848
        %v1850 = vsub.f32 %v1846, %v1849
        %v1851 = vmul.f32 %v1850, 1.442695
        %v1852 = vpow.pop %v1851
        %v1853 = vsel %vm1130, %v1852, 0.0
        %1854 = vadd.xlane.f32.xlu0 %v1853
        %v1855 = vpop.xlane.xlu0 %1854
        %v1856 = vrcp.pop %v1855
        %v1857 = vmul.f32 %v1852, %v1856
        %v1858 = vpack.c.bf16 %v1857, %v1857
        %1859 = vrot.lane.b32.xlu0 %v1626, 72
        %v1860 = vpop.permute.xlu0 %1859
        %v1862 = vsel %vm1130, %v1858, 0
        %v1865 = vsel %vm1134, %v1860, 0
        %1867 = vmatpush.bf16.msra.mxu0 0
        %1868 = vmatpush.bf16.msra.mxu0 0
        %1869 = vmatpush.bf16.msra.mxu0 0
        %1870 = vmatpush.bf16.msra.mxu0 0
        %1871 = vmatpush.bf16.msra.mxu0 0
        %1872 = vmatpush.bf16.msra.mxu0 0
        %1873 = vmatpush.bf16.msra.mxu0 0
        %1874 = vmatpush.bf16.msra.mxu0 %v1865
        %1875 = vmatmul.bf16.gmra.mxu0 %v1862
        %v1876 = vpop.f32.mrf.mxu0
        %v1877 = vadd.f32 0.0, %v1876
        %v1878 = vpop.f32.mrf.mxu0
        %1879 = vdwg.mxu0
        %v1880 = vpack.c.bf16 %v1877, %v1877
        %v1881 = vld [vmem:[#allocation22 + $0xc] sm:$0xf]
        %v1883 = vsel %vm1130, %v1880, 0
        %v1886 = vsel %vm1134, %v1881, 0
        %1888 = vmatpush.bf16.msra.mxu0 0
        %1889 = vmatpush.bf16.msra.mxu0 0
        %1890 = vmatpush.bf16.msra.mxu0 0
        %1891 = vmatpush.bf16.msra.mxu0 0
        %1892 = vmatpush.bf16.msra.mxu0 0
        %1893 = vmatpush.bf16.msra.mxu0 0
        %1894 = vmatpush.bf16.msra.mxu0 0
        %1895 = vmatpush.bf16.msra.mxu0 %v1886
        %1896 = vmatmul.bf16.gmra.mxu0 %v1883
        %v1897 = vpop.f32.mrf.mxu0
        %v1898 = vadd.f32 0.0, %v1897
        %v1899 = vpop.f32.mrf.mxu0
        %1900 = vdwg.mxu0
        %v1901 = vadd.f32 %v1824, %v1898
        %v1902 = vld [vmem:[#allocation23] sm:$0x1]
        %v1904 = vperm.slane %v1902, 0
        %v1906 = vadd.f32 %v1901, %v1904
        %1908 = vrot.lane.b32.xlu0 %v1906, 64
        %v1909 = vpop.permute.xlu0 %1908
        %v1911 = vmul.f32 %v1445, %v1909
        %v1912 = vadd.f32 %v1911, %v1450
        %1914 = vrot.lane.b32.xlu0 %v1912, 64
        %v1915 = vpop.permute.xlu0 %1914
        %v1917 = vadd.f32 %v1453, %v1915
        %v1918 = vsel %vm987, %v1917, 0.0
        %1919 = vadd.xlane.f32.xlu0 %v1918
        %v1920 = vpop.xlane.xlu0 %1919
        %v1921 = vmul.f32 %v1920, %v1028
        %v1922 = vsub.f32 %v1917, %v1921
        %v1923 = vmul.f32 %v1922, %v1922
        %v1924 = vsel %vm987, %v1923, 0.0
        %1925 = vadd.xlane.f32.xlu0 %v1924
        %v1926 = vpop.xlane.xlu0 %1925
        %v1927 = vmul.f32 %v1926, %v1028
        %v1928 = vadd.f32 %v1927, 1e-05
        %v1929 = vrsqrt.pop %v1928
        %v1930 = vmul.f32 %v1929, %v1928
        %v1931 = vmul.f32 %v1930, %v1929
        %v1932 = vmul.f32 0.5, %v1931
        %v1933 = vsub.f32 1.5, %v1932
        %v1934 = vmul.f32 %v1929, %v1933
        %vm1935 = vweird.f32 %v1928
        %vm1936 = vweird.f32 %v1929
        %vm1937 = vmor %vm1935, %vm1936
        %v1938 = vsel %vm1937, %v1929, %v1934
        %v1939 = vmul.f32 %v1922, %v1938
        %v1940 = vperm.slane %v1017, 2
        %v1941 = vmul.f32 %v1939, %v1940
        %v1942 = vperm.slane %v1018, 2
        %v1943 = vadd.f32 %v1941, %v1942
        %v1944 = vpack.c.bf16 %v1943, %v1943
        %v1945 = vld [vmem:[#allocation25] sm:$0xf]
        %v1946 = vld [vmem:[#allocation25 + $0x4] sm:$0xf]
        %v1947 = vld [vmem:[#allocation25 + $0x8] sm:$0xf]
        %v1948 = vld [vmem:[#allocation25 + $0xc] sm:$0xf]
        %v1949 = vld [vmem:[#allocation26] sm:$0x1]
        %v1951 = vperm.slane %v1949, 0
        %v1957 = vunpack.c.l.b16 %v1945
        %v1958 = vunpack.c.l.b16 %v1946
        %v1959 = vunpack.c.l.b16 %v1947
        %v1960 = vunpack.c.l.b16 %v1948
        %v1961 = vpack.c.b16 %v1958, %v1957
        %v1962 = vpack.c.b16 %v1960, %v1959
        %v1966 = vsel %vm987, %v1944, 0
        %1968 = vmatpush.bf16.msra.mxu0 0
        %1969 = vmatpush.bf16.msra.mxu0 0
        %1970 = vmatpush.bf16.msra.mxu0 0
        %1971 = vmatpush.bf16.msra.mxu0 0
        %1972 = vmatpush.bf16.msra.mxu0 0
        %1973 = vmatpush.bf16.msra.mxu0 0
        %1974 = vmatpush.bf16.msra.mxu0 %v1962
        %1975 = vmatpush.bf16.msra.mxu0 %v1961
        %1976 = vmatmul.bf16.gmra.mxu0 %v1966
        %v1977 = vpop.f32.mrf.mxu0
        %v1978 = vadd.f32 %v1951, %v1977
        %v1979 = vpop.f32.mrf.mxu0
        %1980 = vdwg.mxu0
        %v1981 = vmax.f32 %v1978, 0.0
        %v1982 = vpack.c.bf16 %v1981, %v1981
        %v1983 = vld [vmem:[%s19] sm:$0xf]
        %v1984 = vld [vmem:[%s19 + $0x4] sm:$0xf]
        %v1985 = vld [vmem:[%s19 + $0x8] sm:$0xf]
        %v1986 = vld [vmem:[%s19 + $0xc] sm:$0xf]
        %v1987 = vld [vmem:[%s19 + $0x10] sm:$0xf]
        %v1988 = vld [vmem:[%s19 + $0x14] sm:$0xf]
        %v1989 = vld [vmem:[%s19 + $0x18] sm:$0xf]
        %v1990 = vld [vmem:[%s19 + $0x1c] sm:$0xf]
        %v1991 = vld [vmem:[%s20] sm:$0x1]
        %v1993 = vperm.slane %v1991, 0
        %v2003 = vunpack.c.l.b16 %v1983
        %v2004 = vunpack.c.l.b16 %v1984
        %v2005 = vunpack.c.l.b16 %v1985
        %v2006 = vunpack.c.l.b16 %v1986
        %v2007 = vunpack.c.l.b16 %v1987
        %v2008 = vunpack.c.l.b16 %v1988
        %v2009 = vunpack.c.l.b16 %v1989
        %v2010 = vunpack.c.l.b16 %v1990
        %v2011 = vpack.c.b16 %v2004, %v2003
        %v2012 = vpack.c.b16 %v2006, %v2005
        %v2013 = vpack.c.b16 %v2008, %v2007
        %v2014 = vpack.c.b16 %v2010, %v2009
        %vm2019 = vcmask 523264
        %v2021 = vsel %vm2019, %v1982, 0
        %2023 = vmatpush.bf16.msra.mxu0 0
        %2024 = vmatpush.bf16.msra.mxu0 0
        %2025 = vmatpush.bf16.msra.mxu0 0
        %2026 = vmatpush.bf16.msra.mxu0 0
        %2027 = vmatpush.bf16.msra.mxu0 %v2014
        %2028 = vmatpush.bf16.msra.mxu0 %v2013
        %2029 = vmatpush.bf16.msra.mxu0 %v2012
        %2030 = vmatpush.bf16.msra.mxu0 %v2011
        %2031 = vmatmul.bf16.gmra.mxu0 %v2021
        %v2032 = vpop.f32.mrf.mxu0
        %v2033 = vadd.f32 %v1993, %v2032
        %v2034 = vpop.f32.mrf.mxu0
        %2035 = vdwg.mxu0
        %v2036 = vadd.f32 %v1014, 1.0
        %v2037 = vperm.slane %v2036, 0
        %v2038 = vmul.f32 %v2037, %v2033
        %v2039 = vperm.slane %v1014, 0
        %2041 = vrot.lane.b32.xlu0 %v2039, 96
        %v2042 = vpop.permute.xlu0 %2041
        %v2044 = vadd.f32 %v2038, %v2042
        %v2045 = vadd.f32 %v1917, %v2044
        %2046 = vst.msk [vmem:[%s927] sm:$0xff] %vm987, %v2045
        %s2047 = sand.u32 %s510, 1
        %s2048 = scalar_lea.sflag [#allocation4], %s2047
        %s2049 = sand.u32 %s510, 1
        %s2050 = smul.addr %s2049, 8
        %s2051 = scalar_lea.vmem [#allocation28], %s2050
        // Predicated region
        $region169: #{tpu_custom_call.1} parent=103 // pred_check
          %p2052 = pneg %p520
        $region170: #{tpu_custom_call.1} parent=103 // pred_check_branch
          %2054 = sbr.rel (%p2052) target = $region172
        $region171: #{tpu_custom_call.1} parent=103 // pred_region
          %2056 = vsyncadd %s2048, 0
          %s2057 = smul.addr %s46, 8
          %s2058 = scalar_lea.hbm %s21, %s2057
          %s2060 = sshll.u32 %s2051, 4
          %s2061 = int_to_ptr.vmem [resolvable:$true] %s2060
          %s2062 = sshll.u32 %s2058, 4
          %s2063 = int_to_ptr.hbm [resolvable:$true] %s2062
          %2065 = dma.vmem_to_hbm [thread:$0]  %s2061, 128, %s2063, %s2048
        $region172: #{tpu_custom_call.1} parent=103 // pred_fallthru
          _
      $region104: #{tpu_custom_call.1} parent=5 // pred_fallthru
        _
      %p2066 = scmp.le.s32.totalorder 2, %s41
      // Predicated region
      $region173: #{tpu_custom_call.1} parent=5 // pred_check
        %p2067 = pneg %p2066
      $region174: #{tpu_custom_call.1} parent=5 // pred_check_branch
        %2069 = sbr.rel (%p2067) target = $region176
      $region175: #{tpu_custom_call.1} parent=5 // pred_region
        %s2070 = ssub.s32 %s41, 2
        // Predicated region
        $region177: #{tpu_custom_call.1} parent=175 // pred_check
          %p2071 = pneg %p526
        $region178: #{tpu_custom_call.1} parent=175 // pred_check_branch
          %2073 = sbr.rel (%p2071) target = $region180
        $region179: #{tpu_custom_call.1} parent=175 // pred_region
          %s2074 = sand.u32 %s511, 1
          %s2075 = scalar_lea.sflag [#allocation4], %s2074
          %s2076 = sand.u32 %s511, 1
          %s2077 = smul.addr %s2076, 8
          %s2078 = scalar_lea.vmem [#allocation28], %s2077
          %2080 = dma.done %s2075, 128
        $region180: #{tpu_custom_call.1} parent=175 // pred_fallthru
          _
      $region176: #{tpu_custom_call.1} parent=5 // pred_fallthru
        _
    $region6: #{tpu_custom_call.1} parent=1 // loop_footer
      %s45 = sadd.s32 1, %s41
    $region7: #{tpu_custom_call.1} parent=1 // loop_footer_branch
      %40 = sbr.rel target = $region3
    $region8: #{tpu_custom_call.1} parent=1 // loop_exit
      _
    %2081 = vsyncpa [#allocation3], 1
    %s2082 = scalar_lea.sflag [#allocation3], 1
    %2083 = vsyncpa %s2082, 1
    %2084 = vsyncpa [#allocation6], 1
    %2085 = vsyncpa [#allocation9], 1
    %2086 = vsyncpa [#allocation12], 1
    %2087 = vsyncpa [#allocation15], 1
    %2088 = vsyncpa [#allocation18], 1
    %2089 = vsyncpa [#allocation21], 1
    %2090 = vsyncpa [#allocation24], 1
    %2091 = vsyncpa [#allocation27], 1
    %2092 = vsyncpa [#allocation4], 1
    %s2093 = scalar_lea.sflag [#allocation4], 1
    %2094 = vsyncpa %s2093, 1

</llo_original>
